<compile_context>
chip_gen: v7x
topology: tpu7x:2x2x1
jax: 0.10.0
libtpu: 0.0.40
codegen_flags: <defaults>
</compile_context>

<pallas_src>
import functools

import jax
import jax.numpy as jnp
from jax import lax
from jax.experimental import pallas as pl
from jax.experimental.pallas import tpu as pltpu

K = 4        # kernel size
STRIDE = 2
PAD = 1
EPS = 1e-5   # PyTorch InstanceNorm2d default eps
DEFAULT_SPATIAL_TILE = 1024  # lanes per spatial tile (multiple of 128)


def _conv_stats_kernel(x9_ref, w_ref, conv_ref, stats_ref):
    """Phase-decomposed ConvTranspose2d tile + streaming per-channel sum/sumsq.

    x9_ref   : (1, 9, Cin, TS)  shifted input taps (compute dtype)
    w_ref    : (16, Cout, Cin)  per-(phase,tap) weights (compute dtype, resident)
    conv_ref : (1, 4, Cout, TS) raw conv output per phase, f32
    stats_ref: (1, Cout, 2)     [:,0]=sum, [:,1]=sum of squares, f32
                                (same block revisited across the spatial axis)
    """
    s = pl.program_id(1)

    @pl.when(s == 0)
    def _():
        stats_ref[...] = jnp.zeros_like(stats_ref)

    cout = w_ref.shape[1]
    ssum = jnp.zeros((cout, 1), jnp.float32)
    ssq = jnp.zeros((cout, 1), jnp.float32)
    for ph in range(4):                      # output phase (py, px)
        py, px = ph // 2, ph % 2
        acc = None
        for d in range(4):                   # 2x2 taps of this phase
            dy, dx = d // 2, d % 2
            t9 = 3 * (py + dy) + (px + dx)   # which of the 9 shifted views
            part = jnp.dot(w_ref[4 * ph + d], x9_ref[0, t9],
                           preferred_element_type=jnp.float32)
            acc = part if acc is None else acc + part
        conv_ref[0, ph] = acc.astype(conv_ref.dtype)
        ssum = ssum + jnp.sum(acc, axis=1, keepdims=True)
        ssq = ssq + jnp.sum(acc * acc, axis=1, keepdims=True)

    stats_ref[0, :, 0:1] += ssum
    stats_ref[0, :, 1:2] += ssq


def _norm_relu_kernel(conv_ref, stats_ref, act_ref, *, inv_count):
    """Fused InstanceNorm (from streamed stats) + ReLU on one spatial tile."""
    st = stats_ref[0]                                   # (Cout, 2) f32
    mean = st[:, 0:1] * inv_count                       # (Cout, 1)
    var = jnp.maximum(st[:, 1:2] * inv_count - mean * mean, 0.0)
    inv_std = lax.rsqrt(var + EPS)                      # EUP slot
    shift = -mean * inv_std
    for ph in range(4):
        act_ref[0, ph] = jnp.maximum(
            conv_ref[0, ph] * inv_std + shift, 0.0).astype(act_ref.dtype)


def _choose_spatial_tile(hw, requested):
    if requested is not None:
        assert hw % requested == 0 and (requested % 128 == 0 or requested == hw), (
            "spatial_tile must divide H*W and be a multiple of 128 (or equal H*W)")
        return requested
    if hw <= DEFAULT_SPATIAL_TILE or hw % 128 != 0:
        return hw
    t = DEFAULT_SPATIAL_TILE
    while t >= 128:
        if hw % t == 0:
            return t
        t -= 128
    return hw


@functools.partial(jax.jit,
                   static_argnames=("compute_dtype", "out_dtype", "spatial_tile"))
def unet_up_forward(x, skip, weight, *, compute_dtype=jnp.bfloat16,
                    out_dtype=None, spatial_tile=None):
    """x: (N, Cin, H, W); skip: (N, Cskip, 2H, 2W); weight: (Cin, Cout, 4, 4)."""
    n, cin, h, w_ = x.shape
    cout = weight.shape[1]
    oh, ow = STRIDE * h, STRIDE * w_
    hw = h * w_
    out_dtype = out_dtype or x.dtype

    ts = _choose_spatial_tile(hw, spatial_tile)
    n_tiles = hw // ts

    # ---- layout plumbing (XLA): 9 shifted tap views of the zero-padded input ----
    # Output phase (py,px) at position (r,c) reads x_pad[:, r+py+dy, c+px+dx] with
    # dy,dx in {0,1}; the union over phases is the 9 shifts (ey,ex) in {0,1,2}^2.
    xc = x.astype(compute_dtype)
    x_pad = jnp.pad(xc, ((0, 0), (0, 0), (1, 1), (1, 1)))
    taps = [x_pad[:, :, ey:ey + h, ex:ex + w_]
            for ey in range(3) for ex in range(3)]
    x9 = jnp.stack(taps, axis=1).reshape(n, 9, cin, hw)

    # w16[4*(2*py+px) + (2*dy+dx), co, ci] = weight[ci, co, 3-py-2*dy, 3-px-2*dx]
    wt = jnp.transpose(weight, (1, 0, 2, 3)).astype(compute_dtype)   # (Cout,Cin,K,K)
    rows = []
    for py in range(2):
        for px in range(2):
            for dy in range(2):
                for dx in range(2):
                    rows.append(wt[:, :, 3 - py - 2 * dy, 3 - px - 2 * dx])
    w16 = jnp.stack(rows, axis=0)                                    # (16,Cout,Cin)

    # ---- kernel 1: phase conv + streaming instance-norm statistics ----
    conv_raw, stats = pl.pallas_call(
        _conv_stats_kernel,
        out_shape=(
            jax.ShapeDtypeStruct((n, 4, cout, hw), jnp.float32),
            jax.ShapeDtypeStruct((n, cout, 2), jnp.float32),
        ),
        grid_spec=pltpu.PrefetchScalarGridSpec(
            num_scalar_prefetch=0,
            grid=(n, n_tiles),
            in_specs=[
                pl.BlockSpec((1, 9, cin, ts), lambda b, s: (b, 0, 0, s)),
                # constant index map -> weight block stays VMEM-resident
                pl.BlockSpec((16, cout, cin), lambda b, s: (0, 0, 0)),
            ],
            out_specs=(
                pl.BlockSpec((1, 4, cout, ts), lambda b, s: (b, 0, 0, s)),
                # revisited across the spatial axis -> streaming accumulator
                pl.BlockSpec((1, cout, 2), lambda b, s: (b, 0, 0)),
            ),
        ),
        compiler_params=pltpu.CompilerParams(
            dimension_semantics=("parallel", "arbitrary")),
    )(x9, w16)

    # ---- kernel 2: fused normalize (single FMA) + ReLU, fully parallel ----
    act_ph = pl.pallas_call(
        functools.partial(_norm_relu_kernel, inv_count=1.0 / float(oh * ow)),
        out_shape=jax.ShapeDtypeStruct((n, 4, cout, hw), out_dtype),
        grid_spec=pltpu.PrefetchScalarGridSpec(
            num_scalar_prefetch=0,
            grid=(n, n_tiles),
            in_specs=[
                pl.BlockSpec((1, 4, cout, ts), lambda b, s: (b, 0, 0, s)),
                pl.BlockSpec((1, cout, 2), lambda b, s: (b, 0, 0)),
            ],
            out_specs=pl.BlockSpec((1, 4, cout, ts), lambda b, s: (b, 0, 0, s)),
        ),
        compiler_params=pltpu.CompilerParams(
            dimension_semantics=("parallel", "parallel")),
    )(conv_raw, stats)

    # ---- layout plumbing (XLA): interleave phases back to NCHW, concat skip ----
    act = act_ph.reshape(n, 2, 2, cout, h, w_)
    act = jnp.transpose(act, (0, 3, 4, 1, 5, 2)).reshape(n, cout, oh, ow)
    # TODO(synk): nn.Dropout not implemented (module default dropout=0.0 -> identity)
    return jnp.concatenate([act, skip.astype(out_dtype)], axis=1)


def unet_up_reference(x, skip, weight):
    """Pure-JAX reference (equivalent to the PyTorch forward)."""
    w_conv = jnp.transpose(weight[:, :, ::-1, ::-1], (1, 0, 2, 3))
    y = lax.conv_general_dilated(
        x, w_conv, window_strides=(1, 1), padding=[(2, 2), (2, 2)],
        lhs_dilation=(STRIDE, STRIDE),
        dimension_numbers=("NCHW", "OIHW", "NCHW"))
    mean = jnp.mean(y, axis=(2, 3), keepdims=True)
    var = jnp.mean(jnp.square(y - mean), axis=(2, 3), keepdims=True)
    act = jnp.maximum((y - mean) / jnp.sqrt(var + EPS), 0.0)
    return jnp.concatenate([act, skip], axis=1)


if __name__ == "__main__":
    key = jax.random.PRNGKey(0)
    k_x, k_skip, k_w = jax.random.split(key, 3)

    N, CIN, COUT, H, W = 2, 4, 4, 16, 16
    x = jax.random.normal(k_x, (N, CIN, H, W), jnp.float32)
    skip = jax.random.normal(k_skip, (N, COUT, STRIDE * H, STRIDE * W), jnp.float32)
    # ConvTranspose2d weight shape: (in_channels, out_channels, K, K)
    weight = 0.1 * jax.random.normal(k_w, (CIN, COUT, K, K), jnp.float32)

    ref = unet_up_reference(x, skip, weight)

    # f32 matmul path, forced 2-tile spatial grid (exercises streamed statistics).
    out_f32 = jax.block_until_ready(
        unet_up_forward(x, skip, weight, compute_dtype=jnp.float32,
                        spatial_tile=128))
    assert out_f32.shape == (N, 2 * COUT, STRIDE * H, STRIDE * W), out_f32.shape
    assert jnp.allclose(out_f32, ref, atol=2e-4, rtol=2e-4), float(
        jnp.max(jnp.abs(out_f32 - ref)))

    # Default path: bf16 matmul operands with f32 accumulation / statistics.
    out_bf16 = jax.block_until_ready(unet_up_forward(x, skip, weight))
    assert out_bf16.shape == ref.shape, out_bf16.shape
    assert jnp.allclose(out_bf16, ref, atol=5e-2, rtol=5e-2), float(
        jnp.max(jnp.abs(out_bf16 - ref)))

    print("KERNEL_OK")
</pallas_src>

<mosaic_0001>
module attributes {stable_mosaic.version = 11 : i64} {
  func.func @_norm_relu_kernel(%arg0: i32, %arg1: i32, %arg2: memref<1x4x4x128xf32, #tpu.memory_space<vmem>>, %arg3: memref<1x4x2xf32, #tpu.memory_space<vmem>>, %arg4: memref<1x4x4x128xf32, #tpu.memory_space<vmem>>) attributes {dimension_semantics = [#tpu.dimension_semantics<parallel>, #tpu.dimension_semantics<parallel>], iteration_bounds = array<i64: 2, 2>, scalar_prefetch = 0 : i64, scratch_operands = 0 : i64, tpu.core_type = #tpu.core_type<tc>, window_params = [{transform_indices = @transform_0, window_bounds = array<i64: 1, 4, 4, 128>}, {transform_indices = @transform_1, window_bounds = array<i64: 1, 4, 2>}, {transform_indices = @transform_2, window_bounds = array<i64: 1, 4, 4, 128>}]} {
    %c0 = arith.constant 0 : index
    %c0_0 = arith.constant 0 : index
    %c0_1 = arith.constant 0 : index
    %0 = vector.load %arg3[%c0, %c0_0, %c0_1] : memref<1x4x2xf32, #tpu.memory_space<vmem>>, vector<1x4x2xf32>
    %1 = vector.shape_cast %0 : vector<1x4x2xf32> to vector<4x2xf32>
    %2 = vector.extract_strided_slice %1 {offsets = [0, 0], sizes = [4, 1], strides = [1, 1]} : vector<4x2xf32> to vector<4x1xf32>
    %cst = arith.constant 9.765625E-4 : f32
    %3 = vector.broadcast %cst : f32 to vector<4x1xf32>
    %4 = arith.mulf %2, %3 : vector<4x1xf32>
    %5 = vector.extract_strided_slice %1 {offsets = [0, 1], sizes = [4, 1], strides = [1, 1]} : vector<4x2xf32> to vector<4x1xf32>
    %cst_2 = arith.constant 9.765625E-4 : f32
    %6 = vector.broadcast %cst_2 : f32 to vector<4x1xf32>
    %7 = arith.mulf %5, %6 : vector<4x1xf32>
    %8 = arith.mulf %4, %4 : vector<4x1xf32>
    %9 = arith.subf %7, %8 : vector<4x1xf32>
    %cst_3 = arith.constant 0.000000e+00 : f32
    %10 = vector.broadcast %cst_3 : f32 to vector<4x1xf32>
    %11 = arith.maximumf %9, %10 : vector<4x1xf32>
    %cst_4 = arith.constant 9.99999974E-6 : f32
    %12 = vector.broadcast %cst_4 : f32 to vector<4x1xf32>
    %13 = arith.addf %11, %12 : vector<4x1xf32>
    %14 = math.rsqrt %13 : vector<4x1xf32>
    %cst_5 = arith.constant 0.000000e+00 : f32
    %15 = vector.broadcast %cst_5 : f32 to vector<4x1xf32>
    %16 = arith.subf %15, %4 : vector<4x1xf32>
    %17 = arith.mulf %16, %14 : vector<4x1xf32>
    %c0_6 = arith.constant 0 : index
    %c0_7 = arith.constant 0 : index
    %c0_8 = arith.constant 0 : index
    %c0_9 = arith.constant 0 : index
    %18 = vector.load %arg2[%c0_6, %c0_7, %c0_8, %c0_9] : memref<1x4x4x128xf32, #tpu.memory_space<vmem>>, vector<1x1x4x128xf32>
    %19 = vector.shape_cast %18 : vector<1x1x4x128xf32> to vector<4x128xf32>
    %20 = vector.broadcast %14 : vector<4x1xf32> to vector<4x128xf32>
    %21 = arith.mulf %19, %20 : vector<4x128xf32>
    %22 = vector.broadcast %17 : vector<4x1xf32> to vector<4x128xf32>
    %23 = arith.addf %21, %22 : vector<4x128xf32>
    %cst_10 = arith.constant 0.000000e+00 : f32
    %24 = vector.broadcast %cst_10 : f32 to vector<4x128xf32>
    %25 = arith.maximumf %23, %24 : vector<4x128xf32>
    %c0_11 = arith.constant 0 : index
    %c0_12 = arith.constant 0 : index
    %c0_13 = arith.constant 0 : index
    %c0_14 = arith.constant 0 : index
    %26 = vector.load %arg4[%c0_11, %c0_12, %c0_13, %c0_14] : memref<1x4x4x128xf32, #tpu.memory_space<vmem>>, vector<1x1x4x128xf32>
    %27 = vector.shape_cast %26 : vector<1x1x4x128xf32> to vector<4x128xf32>
    %28 = vector.shape_cast %25 : vector<4x128xf32> to vector<1x1x4x128xf32>
    tpu.vector_store %arg4[%c0_11, %c0_12, %c0_13, %c0_14], %28 {strides = array<i32>} : memref<1x4x4x128xf32, #tpu.memory_space<vmem>>, vector<1x1x4x128xf32>,
    %c0_15 = arith.constant 0 : index
    %c1 = arith.constant 1 : index
    %c0_16 = arith.constant 0 : index
    %c0_17 = arith.constant 0 : index
    %29 = vector.load %arg2[%c0_15, %c1, %c0_16, %c0_17] : memref<1x4x4x128xf32, #tpu.memory_space<vmem>>, vector<1x1x4x128xf32>
    %30 = vector.shape_cast %29 : vector<1x1x4x128xf32> to vector<4x128xf32>
    %31 = vector.broadcast %14 : vector<4x1xf32> to vector<4x128xf32>
    %32 = arith.mulf %30, %31 : vector<4x128xf32>
    %33 = vector.broadcast %17 : vector<4x1xf32> to vector<4x128xf32>
    %34 = arith.addf %32, %33 : vector<4x128xf32>
    %cst_18 = arith.constant 0.000000e+00 : f32
    %35 = vector.broadcast %cst_18 : f32 to vector<4x128xf32>
    %36 = arith.maximumf %34, %35 : vector<4x128xf32>
    %c0_19 = arith.constant 0 : index
    %c1_20 = arith.constant 1 : index
    %c0_21 = arith.constant 0 : index
    %c0_22 = arith.constant 0 : index
    %37 = vector.load %arg4[%c0_19, %c1_20, %c0_21, %c0_22] : memref<1x4x4x128xf32, #tpu.memory_space<vmem>>, vector<1x1x4x128xf32>
    %38 = vector.shape_cast %37 : vector<1x1x4x128xf32> to vector<4x128xf32>
    %39 = vector.shape_cast %36 : vector<4x128xf32> to vector<1x1x4x128xf32>
    tpu.vector_store %arg4[%c0_19, %c1_20, %c0_21, %c0_22], %39 {strides = array<i32>} : memref<1x4x4x128xf32, #tpu.memory_space<vmem>>, vector<1x1x4x128xf32>,
    %c0_23 = arith.constant 0 : index
    %c2 = arith.constant 2 : index
    %c0_24 = arith.constant 0 : index
    %c0_25 = arith.constant 0 : index
    %40 = vector.load %arg2[%c0_23, %c2, %c0_24, %c0_25] : memref<1x4x4x128xf32, #tpu.memory_space<vmem>>, vector<1x1x4x128xf32>
    %41 = vector.shape_cast %40 : vector<1x1x4x128xf32> to vector<4x128xf32>
    %42 = vector.broadcast %14 : vector<4x1xf32> to vector<4x128xf32>
    %43 = arith.mulf %41, %42 : vector<4x128xf32>
    %44 = vector.broadcast %17 : vector<4x1xf32> to vector<4x128xf32>
    %45 = arith.addf %43, %44 : vector<4x128xf32>
    %cst_26 = arith.constant 0.000000e+00 : f32
    %46 = vector.broadcast %cst_26 : f32 to vector<4x128xf32>
    %47 = arith.maximumf %45, %46 : vector<4x128xf32>
    %c0_27 = arith.constant 0 : index
    %c2_28 = arith.constant 2 : index
    %c0_29 = arith.constant 0 : index
    %c0_30 = arith.constant 0 : index
    %48 = vector.load %arg4[%c0_27, %c2_28, %c0_29, %c0_30] : memref<1x4x4x128xf32, #tpu.memory_space<vmem>>, vector<1x1x4x128xf32>
    %49 = vector.shape_cast %48 : vector<1x1x4x128xf32> to vector<4x128xf32>
    %50 = vector.shape_cast %47 : vector<4x128xf32> to vector<1x1x4x128xf32>
    tpu.vector_store %arg4[%c0_27, %c2_28, %c0_29, %c0_30], %50 {strides = array<i32>} : memref<1x4x4x128xf32, #tpu.memory_space<vmem>>, vector<1x1x4x128xf32>,
    %c0_31 = arith.constant 0 : index
    %c3 = arith.constant 3 : index
    %c0_32 = arith.constant 0 : index
    %c0_33 = arith.constant 0 : index
    %51 = vector.load %arg2[%c0_31, %c3, %c0_32, %c0_33] : memref<1x4x4x128xf32, #tpu.memory_space<vmem>>, vector<1x1x4x128xf32>
    %52 = vector.shape_cast %51 : vector<1x1x4x128xf32> to vector<4x128xf32>
    %53 = vector.broadcast %14 : vector<4x1xf32> to vector<4x128xf32>
    %54 = arith.mulf %52, %53 : vector<4x128xf32>
    %55 = vector.broadcast %17 : vector<4x1xf32> to vector<4x128xf32>
    %56 = arith.addf %54, %55 : vector<4x128xf32>
    %cst_34 = arith.constant 0.000000e+00 : f32
    %57 = vector.broadcast %cst_34 : f32 to vector<4x128xf32>
    %58 = arith.maximumf %56, %57 : vector<4x128xf32>
    %c0_35 = arith.constant 0 : index
    %c3_36 = arith.constant 3 : index
    %c0_37 = arith.constant 0 : index
    %c0_38 = arith.constant 0 : index
    %59 = vector.load %arg4[%c0_35, %c3_36, %c0_37, %c0_38] : memref<1x4x4x128xf32, #tpu.memory_space<vmem>>, vector<1x1x4x128xf32>
    %60 = vector.shape_cast %59 : vector<1x1x4x128xf32> to vector<4x128xf32>
    %61 = vector.shape_cast %58 : vector<4x128xf32> to vector<1x1x4x128xf32>
    tpu.vector_store %arg4[%c0_35, %c3_36, %c0_37, %c0_38], %61 {strides = array<i32>} : memref<1x4x4x128xf32, #tpu.memory_space<vmem>>, vector<1x1x4x128xf32>,
    return
  }
  func.func @transform_0(%arg0: i32, %arg1: i32) -> (i32, i32, i32, i32) {
    %c0_i32 = arith.constant 0 : i32
    %c0_i32_0 = arith.constant 0 : i32
    %c0_i32_1 = arith.constant 0 : i32
    return %arg0, %c0_i32, %c0_i32_0, %arg1 : i32, i32, i32, i32
  }
  func.func @transform_1(%arg0: i32, %arg1: i32) -> (i32, i32, i32) {
    %c0_i32 = arith.constant 0 : i32
    %c0_i32_0 = arith.constant 0 : i32
    %c0_i32_1 = arith.constant 0 : i32
    return %arg0, %c0_i32, %c0_i32_0 : i32, i32, i32
  }
  func.func @transform_2(%arg0: i32, %arg1: i32) -> (i32, i32, i32, i32) {
    %c0_i32 = arith.constant 0 : i32
    %c0_i32_0 = arith.constant 0 : i32
    %c0_i32_1 = arith.constant 0 : i32
    return %arg0, %c0_i32, %c0_i32_0, %arg1 : i32, i32, i32, i32
  }
}

module attributes {stable_mosaic.version = 11 : i64} {
  func.func @_conv_stats_kernel(%arg0: i32, %arg1: i32, %arg2: memref<1x9x4x128xf32, #tpu.memory_space<vmem>>, %arg3: memref<16x4x4xf32, #tpu.memory_space<vmem>>, %arg4: memref<1x4x4x128xf32, #tpu.memory_space<vmem>>, %arg5: memref<1x4x2xf32, #tpu.memory_space<vmem>>) attributes {dimension_semantics = [#tpu.dimension_semantics<parallel>, #tpu.dimension_semantics<arbitrary>], iteration_bounds = array<i64: 2, 2>, scalar_prefetch = 0 : i64, scratch_operands = 0 : i64, tpu.core_type = #tpu.core_type<tc>, window_params = [{transform_indices = @transform_0, window_bounds = array<i64: 1, 9, 4, 128>}, {pipeline_mode = #tpu.pipeline_mode<synchronous>, transform_indices = @transform_1, window_bounds = array<i64: 16, 4, 4>}, {transform_indices = @transform_2, window_bounds = array<i64: 1, 4, 4, 128>}, {transform_indices = @transform_3, window_bounds = array<i64: 1, 4, 2>}]} {
    %c0_i32 = arith.constant 0 : i32
    %0 = arith.cmpi eq, %arg1, %c0_i32 : i32
    %1 = arith.extui %0 : i1 to i32
    %c0_i32_0 = arith.constant 0 : i32
    %2 = arith.cmpi ne, %1, %c0_i32_0 : i32
    scf.if %2 {
      %cst_150 = arith.constant 0.000000e+00 : f32
      %149 = vector.broadcast %cst_150 : f32 to vector<1x4x2xf32>
      %c0_151 = arith.constant 0 : index
      %c0_152 = arith.constant 0 : index
      %c0_153 = arith.constant 0 : index
      %150 = vector.load %arg5[%c0_151, %c0_152, %c0_153] : memref<1x4x2xf32, #tpu.memory_space<vmem>>, vector<1x4x2xf32>
      tpu.vector_store %arg5[%c0_151, %c0_152, %c0_153], %149 {strides = array<i32>} : memref<1x4x2xf32, #tpu.memory_space<vmem>>, vector<1x4x2xf32>,
    } else {
    }
    %cst = arith.constant 0.000000e+00 : f32
    %3 = vector.broadcast %cst : f32 to vector<4x1xf32>
    %cst_1 = arith.constant 0.000000e+00 : f32
    %4 = vector.broadcast %cst_1 : f32 to vector<4x1xf32>
    %c0 = arith.constant 0 : index
    %c0_2 = arith.constant 0 : index
    %c0_3 = arith.constant 0 : index
    %5 = vector.load %arg3[%c0, %c0_2, %c0_3] : memref<16x4x4xf32, #tpu.memory_space<vmem>>, vector<1x4x4xf32>
    %6 = vector.shape_cast %5 : vector<1x4x4xf32> to vector<4x4xf32>
    %c0_4 = arith.constant 0 : index
    %c0_5 = arith.constant 0 : index
    %c0_6 = arith.constant 0 : index
    %c0_7 = arith.constant 0 : index
    %7 = vector.load %arg2[%c0_4, %c0_5, %c0_6, %c0_7] : memref<1x9x4x128xf32, #tpu.memory_space<vmem>>, vector<1x1x4x128xf32>
    %8 = vector.shape_cast %7 : vector<1x1x4x128xf32> to vector<4x128xf32>
    %cst_8 = arith.constant dense<0.000000e+00> : vector<4x128xf32>
    %9 = tpu.matmul %6, %8, %cst_8 {dimension_numbers = #tpu.dot_dimension_numbers<[1], [0], [0], [1], [0, 0, 1, 1], [], []>} : vector<4x4xf32>, vector<4x128xf32>, vector<4x128xf32> -> vector<4x128xf32>
    %c1 = arith.constant 1 : index
    %c0_9 = arith.constant 0 : index
    %c0_10 = arith.constant 0 : index
    %10 = vector.load %arg3[%c1, %c0_9, %c0_10] : memref<16x4x4xf32, #tpu.memory_space<vmem>>, vector<1x4x4xf32>
    %11 = vector.shape_cast %10 : vector<1x4x4xf32> to vector<4x4xf32>
    %c0_11 = arith.constant 0 : index
    %c1_12 = arith.constant 1 : index
    %c0_13 = arith.constant 0 : index
    %c0_14 = arith.constant 0 : index
    %12 = vector.load %arg2[%c0_11, %c1_12, %c0_13, %c0_14] : memref<1x9x4x128xf32, #tpu.memory_space<vmem>>, vector<1x1x4x128xf32>
    %13 = vector.shape_cast %12 : vector<1x1x4x128xf32> to vector<4x128xf32>
    %cst_15 = arith.constant dense<0.000000e+00> : vector<4x128xf32>
    %14 = tpu.matmul %11, %13, %cst_15 {dimension_numbers = #tpu.dot_dimension_numbers<[1], [0], [0], [1], [0, 0, 1, 1], [], []>} : vector<4x4xf32>, vector<4x128xf32>, vector<4x128xf32> -> vector<4x128xf32>
    %15 = arith.addf %9, %14 : vector<4x128xf32>
    %c2 = arith.constant 2 : index
    %c0_16 = arith.constant 0 : index
    %c0_17 = arith.constant 0 : index
    %16 = vector.load %arg3[%c2, %c0_16, %c0_17] : memref<16x4x4xf32, #tpu.memory_space<vmem>>, vector<1x4x4xf32>
    %17 = vector.shape_cast %16 : vector<1x4x4xf32> to vector<4x4xf32>
    %c0_18 = arith.constant 0 : index
    %c3 = arith.constant 3 : index
    %c0_19 = arith.constant 0 : index
    %c0_20 = arith.constant 0 : index
    %18 = vector.load %arg2[%c0_18, %c3, %c0_19, %c0_20] : memref<1x9x4x128xf32, #tpu.memory_space<vmem>>, vector<1x1x4x128xf32>
    %19 = vector.shape_cast %18 : vector<1x1x4x128xf32> to vector<4x128xf32>
    %cst_21 = arith.constant dense<0.000000e+00> : vector<4x128xf32>
    %20 = tpu.matmul %17, %19, %cst_21 {dimension_numbers = #tpu.dot_dimension_numbers<[1], [0], [0], [1], [0, 0, 1, 1], [], []>} : vector<4x4xf32>, vector<4x128xf32>, vector<4x128xf32> -> vector<4x128xf32>
    %21 = arith.addf %15, %20 : vector<4x128xf32>
    %c3_22 = arith.constant 3 : index
    %c0_23 = arith.constant 0 : index
    %c0_24 = arith.constant 0 : index
    %22 = vector.load %arg3[%c3_22, %c0_23, %c0_24] : memref<16x4x4xf32, #tpu.memory_space<vmem>>, vector<1x4x4xf32>
    %23 = vector.shape_cast %22 : vector<1x4x4xf32> to vector<4x4xf32>
    %c0_25 = arith.constant 0 : index
    %c4 = arith.constant 4 : index
    %c0_26 = arith.constant 0 : index
    %c0_27 = arith.constant 0 : index
    %24 = vector.load %arg2[%c0_25, %c4, %c0_26, %c0_27] : memref<1x9x4x128xf32, #tpu.memory_space<vmem>>, vector<1x1x4x128xf32>
    %25 = vector.shape_cast %24 : vector<1x1x4x128xf32> to vector<4x128xf32>
    %cst_28 = arith.constant dense<0.000000e+00> : vector<4x128xf32>
    %26 = tpu.matmul %23, %25, %cst_28 {dimension_numbers = #tpu.dot_dimension_numbers<[1], [0], [0], [1], [0, 0, 1, 1], [], []>} : vector<4x4xf32>, vector<4x128xf32>, vector<4x128xf32> -> vector<4x128xf32>
    %27 = arith.addf %21, %26 : vector<4x128xf32>
    %c0_29 = arith.constant 0 : index
    %c0_30 = arith.constant 0 : index
    %c0_31 = arith.constant 0 : index
    %c0_32 = arith.constant 0 : index
    %28 = vector.load %arg4[%c0_29, %c0_30, %c0_31, %c0_32] : memref<1x4x4x128xf32, #tpu.memory_space<vmem>>, vector<1x1x4x128xf32>
    %29 = vector.shape_cast %28 : vector<1x1x4x128xf32> to vector<4x128xf32>
    %30 = vector.shape_cast %27 : vector<4x128xf32> to vector<1x1x4x128xf32>
    tpu.vector_store %arg4[%c0_29, %c0_30, %c0_31, %c0_32], %30 {strides = array<i32>} : memref<1x4x4x128xf32, #tpu.memory_space<vmem>>, vector<1x1x4x128xf32>,
    %cst_33 = arith.constant dense<0.000000e+00> : vector<4xf32>
    %31 = vector.multi_reduction <add>, %27, %cst_33 [1] : vector<4x128xf32> to vector<4xf32>
    %32 = vector.shape_cast %31 : vector<4xf32> to vector<4x1xf32>
    %33 = arith.addf %3, %32 : vector<4x1xf32>
    %34 = arith.mulf %27, %27 : vector<4x128xf32>
    %cst_34 = arith.constant dense<0.000000e+00> : vector<4xf32>
    %35 = vector.multi_reduction <add>, %34, %cst_34 [1] : vector<4x128xf32> to vector<4xf32>
    %36 = vector.shape_cast %35 : vector<4xf32> to vector<4x1xf32>
    %37 = arith.addf %4, %36 : vector<4x1xf32>
    %c4_35 = arith.constant 4 : index
    %c0_36 = arith.constant 0 : index
    %c0_37 = arith.constant 0 : index
    %38 = vector.load %arg3[%c4_35, %c0_36, %c0_37] : memref<16x4x4xf32, #tpu.memory_space<vmem>>, vector<1x4x4xf32>
    %39 = vector.shape_cast %38 : vector<1x4x4xf32> to vector<4x4xf32>
    %c0_38 = arith.constant 0 : index
    %c1_39 = arith.constant 1 : index
    %c0_40 = arith.constant 0 : index
    %c0_41 = arith.constant 0 : index
    %40 = vector.load %arg2[%c0_38, %c1_39, %c0_40, %c0_41] : memref<1x9x4x128xf32, #tpu.memory_space<vmem>>, vector<1x1x4x128xf32>
    %41 = vector.shape_cast %40 : vector<1x1x4x128xf32> to vector<4x128xf32>
    %cst_42 = arith.constant dense<0.000000e+00> : vector<4x128xf32>
    %42 = tpu.matmul %39, %41, %cst_42 {dimension_numbers = #tpu.dot_dimension_numbers<[1], [0], [0], [1], [0, 0, 1, 1], [], []>} : vector<4x4xf32>, vector<4x128xf32>, vector<4x128xf32> -> vector<4x128xf32>
    %c5 = arith.constant 5 : index
    %c0_43 = arith.constant 0 : index
    %c0_44 = arith.constant 0 : index
    %43 = vector.load %arg3[%c5, %c0_43, %c0_44] : memref<16x4x4xf32, #tpu.memory_space<vmem>>, vector<1x4x4xf32>
    %44 = vector.shape_cast %43 : vector<1x4x4xf32> to vector<4x4xf32>
    %c0_45 = arith.constant 0 : index
    %c2_46 = arith.constant 2 : index
    %c0_47 = arith.constant 0 : index
    %c0_48 = arith.constant 0 : index
    %45 = vector.load %arg2[%c0_45, %c2_46, %c0_47, %c0_48] : memref<1x9x4x128xf32, #tpu.memory_space<vmem>>, vector<1x1x4x128xf32>
    %46 = vector.shape_cast %45 : vector<1x1x4x128xf32> to vector<4x128xf32>
    %cst_49 = arith.constant dense<0.000000e+00> : vector<4x128xf32>
    %47 = tpu.matmul %44, %46, %cst_49 {dimension_numbers = #tpu.dot_dimension_numbers<[1], [0], [0], [1], [0, 0, 1, 1], [], []>} : vector<4x4xf32>, vector<4x128xf32>, vector<4x128xf32> -> vector<4x128xf32>
    %48 = arith.addf %42, %47 : vector<4x128xf32>
    %c6 = arith.constant 6 : index
    %c0_50 = arith.constant 0 : index
    %c0_51 = arith.constant 0 : index
    %49 = vector.load %arg3[%c6, %c0_50, %c0_51] : memref<16x4x4xf32, #tpu.memory_space<vmem>>, vector<1x4x4xf32>
    %50 = vector.shape_cast %49 : vector<1x4x4xf32> to vector<4x4xf32>
    %c0_52 = arith.constant 0 : index
    %c4_53 = arith.constant 4 : index
    %c0_54 = arith.constant 0 : index
    %c0_55 = arith.constant 0 : index
    %51 = vector.load %arg2[%c0_52, %c4_53, %c0_54, %c0_55] : memref<1x9x4x128xf32, #tpu.memory_space<vmem>>, vector<1x1x4x128xf32>
    %52 = vector.shape_cast %51 : vector<1x1x4x128xf32> to vector<4x128xf32>
    %cst_56 = arith.constant dense<0.000000e+00> : vector<4x128xf32>
    %53 = tpu.matmul %50, %52, %cst_56 {dimension_numbers = #tpu.dot_dimension_numbers<[1], [0], [0], [1], [0, 0, 1, 1], [], []>} : vector<4x4xf32>, vector<4x128xf32>, vector<4x128xf32> -> vector<4x128xf32>
    %54 = arith.addf %48, %53 : vector<4x128xf32>
    %c7 = arith.constant 7 : index
    %c0_57 = arith.constant 0 : index
    %c0_58 = arith.constant 0 : index
    %55 = vector.load %arg3[%c7, %c0_57, %c0_58] : memref<16x4x4xf32, #tpu.memory_space<vmem>>, vector<1x4x4xf32>
    %56 = vector.shape_cast %55 : vector<1x4x4xf32> to vector<4x4xf32>
    %c0_59 = arith.constant 0 : index
    %c5_60 = arith.constant 5 : index
    %c0_61 = arith.constant 0 : index
    %c0_62 = arith.constant 0 : index
    %57 = vector.load %arg2[%c0_59, %c5_60, %c0_61, %c0_62] : memref<1x9x4x128xf32, #tpu.memory_space<vmem>>, vector<1x1x4x128xf32>
    %58 = vector.shape_cast %57 : vector<1x1x4x128xf32> to vector<4x128xf32>
    %cst_63 = arith.constant dense<0.000000e+00> : vector<4x128xf32>
    %59 = tpu.matmul %56, %58, %cst_63 {dimension_numbers = #tpu.dot_dimension_numbers<[1], [0], [0], [1], [0, 0, 1, 1], [], []>} : vector<4x4xf32>, vector<4x128xf32>, vector<4x128xf32> -> vector<4x128xf32>
    %60 = arith.addf %54, %59 : vector<4x128xf32>
    %c0_64 = arith.constant 0 : index
    %c1_65 = arith.constant 1 : index
    %c0_66 = arith.constant 0 : index
    %c0_67 = arith.constant 0 : index
    %61 = vector.load %arg4[%c0_64, %c1_65, %c0_66, %c0_67] : memref<1x4x4x128xf32, #tpu.memory_space<vmem>>, vector<1x1x4x128xf32>
    %62 = vector.shape_cast %61 : vector<1x1x4x128xf32> to vector<4x128xf32>
    %63 = vector.shape_cast %60 : vector<4x128xf32> to vector<1x1x4x128xf32>
    tpu.vector_store %arg4[%c0_64, %c1_65, %c0_66, %c0_67], %63 {strides = array<i32>} : memref<1x4x4x128xf32, #tpu.memory_space<vmem>>, vector<1x1x4x128xf32>,
    %cst_68 = arith.constant dense<0.000000e+00> : vector<4xf32>
    %64 = vector.multi_reduction <add>, %60, %cst_68 [1] : vector<4x128xf32> to vector<4xf32>
    %65 = vector.shape_cast %64 : vector<4xf32> to vector<4x1xf32>
    %66 = arith.addf %33, %65 : vector<4x1xf32>
    %67 = arith.mulf %60, %60 : vector<4x128xf32>
    %cst_69 = arith.constant dense<0.000000e+00> : vector<4xf32>
    %68 = vector.multi_reduction <add>, %67, %cst_69 [1] : vector<4x128xf32> to vector<4xf32>
    %69 = vector.shape_cast %68 : vector<4xf32> to vector<4x1xf32>
    %70 = arith.addf %37, %69 : vector<4x1xf32>
    %c8 = arith.constant 8 : index
    %c0_70 = arith.constant 0 : index
    %c0_71 = arith.constant 0 : index
    %71 = vector.load %arg3[%c8, %c0_70, %c0_71] : memref<16x4x4xf32, #tpu.memory_space<vmem>>, vector<1x4x4xf32>
    %72 = vector.shape_cast %71 : vector<1x4x4xf32> to vector<4x4xf32>
    %c0_72 = arith.constant 0 : index
    %c3_73 = arith.constant 3 : index
    %c0_74 = arith.constant 0 : index
    %c0_75 = arith.constant 0 : index
    %73 = vector.load %arg2[%c0_72, %c3_73, %c0_74, %c0_75] : memref<1x9x4x128xf32, #tpu.memory_space<vmem>>, vector<1x1x4x128xf32>
    %74 = vector.shape_cast %73 : vector<1x1x4x128xf32> to vector<4x128xf32>
    %cst_76 = arith.constant dense<0.000000e+00> : vector<4x128xf32>
    %75 = tpu.matmul %72, %74, %cst_76 {dimension_numbers = #tpu.dot_dimension_numbers<[1], [0], [0], [1], [0, 0, 1, 1], [], []>} : vector<4x4xf32>, vector<4x128xf32>, vector<4x128xf32> -> vector<4x128xf32>
    %c9 = arith.constant 9 : index
    %c0_77 = arith.constant 0 : index
    %c0_78 = arith.constant 0 : index
    %76 = vector.load %arg3[%c9, %c0_77, %c0_78] : memref<16x4x4xf32, #tpu.memory_space<vmem>>, vector<1x4x4xf32>
    %77 = vector.shape_cast %76 : vector<1x4x4xf32> to vector<4x4xf32>
    %c0_79 = arith.constant 0 : index
    %c4_80 = arith.constant 4 : index
    %c0_81 = arith.constant 0 : index
    %c0_82 = arith.constant 0 : index
    %78 = vector.load %arg2[%c0_79, %c4_80, %c0_81, %c0_82] : memref<1x9x4x128xf32, #tpu.memory_space<vmem>>, vector<1x1x4x128xf32>
    %79 = vector.shape_cast %78 : vector<1x1x4x128xf32> to vector<4x128xf32>
    %cst_83 = arith.constant dense<0.000000e+00> : vector<4x128xf32>
    %80 = tpu.matmul %77, %79, %cst_83 {dimension_numbers = #tpu.dot_dimension_numbers<[1], [0], [0], [1], [0, 0, 1, 1], [], []>} : vector<4x4xf32>, vector<4x128xf32>, vector<4x128xf32> -> vector<4x128xf32>
    %81 = arith.addf %75, %80 : vector<4x128xf32>
    %c10 = arith.constant 10 : index
    %c0_84 = arith.constant 0 : index
    %c0_85 = arith.constant 0 : index
    %82 = vector.load %arg3[%c10, %c0_84, %c0_85] : memref<16x4x4xf32, #tpu.memory_space<vmem>>, vector<1x4x4xf32>
    %83 = vector.shape_cast %82 : vector<1x4x4xf32> to vector<4x4xf32>
    %c0_86 = arith.constant 0 : index
    %c6_87 = arith.constant 6 : index
    %c0_88 = arith.constant 0 : index
    %c0_89 = arith.constant 0 : index
    %84 = vector.load %arg2[%c0_86, %c6_87, %c0_88, %c0_89] : memref<1x9x4x128xf32, #tpu.memory_space<vmem>>, vector<1x1x4x128xf32>
    %85 = vector.shape_cast %84 : vector<1x1x4x128xf32> to vector<4x128xf32>
    %cst_90 = arith.constant dense<0.000000e+00> : vector<4x128xf32>
    %86 = tpu.matmul %83, %85, %cst_90 {dimension_numbers = #tpu.dot_dimension_numbers<[1], [0], [0], [1], [0, 0, 1, 1], [], []>} : vector<4x4xf32>, vector<4x128xf32>, vector<4x128xf32> -> vector<4x128xf32>
    %87 = arith.addf %81, %86 : vector<4x128xf32>
    %c11 = arith.constant 11 : index
    %c0_91 = arith.constant 0 : index
    %c0_92 = arith.constant 0 : index
    %88 = vector.load %arg3[%c11, %c0_91, %c0_92] : memref<16x4x4xf32, #tpu.memory_space<vmem>>, vector<1x4x4xf32>
    %89 = vector.shape_cast %88 : vector<1x4x4xf32> to vector<4x4xf32>
    %c0_93 = arith.constant 0 : index
    %c7_94 = arith.constant 7 : index
    %c0_95 = arith.constant 0 : index
    %c0_96 = arith.constant 0 : index
    %90 = vector.load %arg2[%c0_93, %c7_94, %c0_95, %c0_96] : memref<1x9x4x128xf32, #tpu.memory_space<vmem>>, vector<1x1x4x128xf32>
    %91 = vector.shape_cast %90 : vector<1x1x4x128xf32> to vector<4x128xf32>
    %cst_97 = arith.constant dense<0.000000e+00> : vector<4x128xf32>
    %92 = tpu.matmul %89, %91, %cst_97 {dimension_numbers = #tpu.dot_dimension_numbers<[1], [0], [0], [1], [0, 0, 1, 1], [], []>} : vector<4x4xf32>, vector<4x128xf32>, vector<4x128xf32> -> vector<4x128xf32>
    %93 = arith.addf %87, %92 : vector<4x128xf32>
    %c0_98 = arith.constant 0 : index
    %c2_99 = arith.constant 2 : index
    %c0_100 = arith.constant 0 : index
    %c0_101 = arith.constant 0 : index
    %94 = vector.load %arg4[%c0_98, %c2_99, %c0_100, %c0_101] : memref<1x4x4x128xf32, #tpu.memory_space<vmem>>, vector<1x1x4x128xf32>
    %95 = vector.shape_cast %94 : vector<1x1x4x128xf32> to vector<4x128xf32>
    %96 = vector.shape_cast %93 : vector<4x128xf32> to vector<1x1x4x128xf32>
    tpu.vector_store %arg4[%c0_98, %c2_99, %c0_100, %c0_101], %96 {strides = array<i32>} : memref<1x4x4x128xf32, #tpu.memory_space<vmem>>, vector<1x1x4x128xf32>,
    %cst_102 = arith.constant dense<0.000000e+00> : vector<4xf32>
    %97 = vector.multi_reduction <add>, %93, %cst_102 [1] : vector<4x128xf32> to vector<4xf32>
    %98 = vector.shape_cast %97 : vector<4xf32> to vector<4x1xf32>
    %99 = arith.addf %66, %98 : vector<4x1xf32>
    %100 = arith.mulf %93, %93 : vector<4x128xf32>
    %cst_103 = arith.constant dense<0.000000e+00> : vector<4xf32>
    %101 = vector.multi_reduction <add>, %100, %cst_103 [1] : vector<4x128xf32> to vector<4xf32>
    %102 = vector.shape_cast %101 : vector<4xf32> to vector<4x1xf32>
    %103 = arith.addf %70, %102 : vector<4x1xf32>
    %c12 = arith.constant 12 : index
    %c0_104 = arith.constant 0 : index
    %c0_105 = arith.constant 0 : index
    %104 = vector.load %arg3[%c12, %c0_104, %c0_105] : memref<16x4x4xf32, #tpu.memory_space<vmem>>, vector<1x4x4xf32>
    %105 = vector.shape_cast %104 : vector<1x4x4xf32> to vector<4x4xf32>
    %c0_106 = arith.constant 0 : index
    %c4_107 = arith.constant 4 : index
    %c0_108 = arith.constant 0 : index
    %c0_109 = arith.constant 0 : index
    %106 = vector.load %arg2[%c0_106, %c4_107, %c0_108, %c0_109] : memref<1x9x4x128xf32, #tpu.memory_space<vmem>>, vector<1x1x4x128xf32>
    %107 = vector.shape_cast %106 : vector<1x1x4x128xf32> to vector<4x128xf32>
    %cst_110 = arith.constant dense<0.000000e+00> : vector<4x128xf32>
    %108 = tpu.matmul %105, %107, %cst_110 {dimension_numbers = #tpu.dot_dimension_numbers<[1], [0], [0], [1], [0, 0, 1, 1], [], []>} : vector<4x4xf32>, vector<4x128xf32>, vector<4x128xf32> -> vector<4x128xf32>
    %c13 = arith.constant 13 : index
    %c0_111 = arith.constant 0 : index
    %c0_112 = arith.constant 0 : index
    %109 = vector.load %arg3[%c13, %c0_111, %c0_112] : memref<16x4x4xf32, #tpu.memory_space<vmem>>, vector<1x4x4xf32>
    %110 = vector.shape_cast %109 : vector<1x4x4xf32> to vector<4x4xf32>
    %c0_113 = arith.constant 0 : index
    %c5_114 = arith.constant 5 : index
    %c0_115 = arith.constant 0 : index
    %c0_116 = arith.constant 0 : index
    %111 = vector.load %arg2[%c0_113, %c5_114, %c0_115, %c0_116] : memref<1x9x4x128xf32, #tpu.memory_space<vmem>>, vector<1x1x4x128xf32>
    %112 = vector.shape_cast %111 : vector<1x1x4x128xf32> to vector<4x128xf32>
    %cst_117 = arith.constant dense<0.000000e+00> : vector<4x128xf32>
    %113 = tpu.matmul %110, %112, %cst_117 {dimension_numbers = #tpu.dot_dimension_numbers<[1], [0], [0], [1], [0, 0, 1, 1], [], []>} : vector<4x4xf32>, vector<4x128xf32>, vector<4x128xf32> -> vector<4x128xf32>
    %114 = arith.addf %108, %113 : vector<4x128xf32>
    %c14 = arith.constant 14 : index
    %c0_118 = arith.constant 0 : index
    %c0_119 = arith.constant 0 : index
    %115 = vector.load %arg3[%c14, %c0_118, %c0_119] : memref<16x4x4xf32, #tpu.memory_space<vmem>>, vector<1x4x4xf32>
    %116 = vector.shape_cast %115 : vector<1x4x4xf32> to vector<4x4xf32>
    %c0_120 = arith.constant 0 : index
    %c7_121 = arith.constant 7 : index
    %c0_122 = arith.constant 0 : index
    %c0_123 = arith.constant 0 : index
    %117 = vector.load %arg2[%c0_120, %c7_121, %c0_122, %c0_123] : memref<1x9x4x128xf32, #tpu.memory_space<vmem>>, vector<1x1x4x128xf32>
    %118 = vector.shape_cast %117 : vector<1x1x4x128xf32> to vector<4x128xf32>
    %cst_124 = arith.constant dense<0.000000e+00> : vector<4x128xf32>
    %119 = tpu.matmul %116, %118, %cst_124 {dimension_numbers = #tpu.dot_dimension_numbers<[1], [0], [0], [1], [0, 0, 1, 1], [], []>} : vector<4x4xf32>, vector<4x128xf32>, vector<4x128xf32> -> vector<4x128xf32>
    %120 = arith.addf %114, %119 : vector<4x128xf32>
    %c15 = arith.constant 15 : index
    %c0_125 = arith.constant 0 : index
    %c0_126 = arith.constant 0 : index
    %121 = vector.load %arg3[%c15, %c0_125, %c0_126] : memref<16x4x4xf32, #tpu.memory_space<vmem>>, vector<1x4x4xf32>
    %122 = vector.shape_cast %121 : vector<1x4x4xf32> to vector<4x4xf32>
    %c0_127 = arith.constant 0 : index
    %c8_128 = arith.constant 8 : index
    %c0_129 = arith.constant 0 : index
    %c0_130 = arith.constant 0 : index
    %123 = vector.load %arg2[%c0_127, %c8_128, %c0_129, %c0_130] : memref<1x9x4x128xf32, #tpu.memory_space<vmem>>, vector<1x1x4x128xf32>
    %124 = vector.shape_cast %123 : vector<1x1x4x128xf32> to vector<4x128xf32>
    %cst_131 = arith.constant dense<0.000000e+00> : vector<4x128xf32>
    %125 = tpu.matmul %122, %124, %cst_131 {dimension_numbers = #tpu.dot_dimension_numbers<[1], [0], [0], [1], [0, 0, 1, 1], [], []>} : vector<4x4xf32>, vector<4x128xf32>, vector<4x128xf32> -> vector<4x128xf32>
    %126 = arith.addf %120, %125 : vector<4x128xf32>
    %c0_132 = arith.constant 0 : index
    %c3_133 = arith.constant 3 : index
    %c0_134 = arith.constant 0 : index
    %c0_135 = arith.constant 0 : index
    %127 = vector.load %arg4[%c0_132, %c3_133, %c0_134, %c0_135] : memref<1x4x4x128xf32, #tpu.memory_space<vmem>>, vector<1x1x4x128xf32>
    %128 = vector.shape_cast %127 : vector<1x1x4x128xf32> to vector<4x128xf32>
    %129 = vector.shape_cast %126 : vector<4x128xf32> to vector<1x1x4x128xf32>
    tpu.vector_store %arg4[%c0_132, %c3_133, %c0_134, %c0_135], %129 {strides = array<i32>} : memref<1x4x4x128xf32, #tpu.memory_space<vmem>>, vector<1x1x4x128xf32>,
    %cst_136 = arith.constant dense<0.000000e+00> : vector<4xf32>
    %130 = vector.multi_reduction <add>, %126, %cst_136 [1] : vector<4x128xf32> to vector<4xf32>
    %131 = vector.shape_cast %130 : vector<4xf32> to vector<4x1xf32>
    %132 = arith.addf %99, %131 : vector<4x1xf32>
    %133 = arith.mulf %126, %126 : vector<4x128xf32>
    %cst_137 = arith.constant dense<0.000000e+00> : vector<4xf32>
    %134 = vector.multi_reduction <add>, %133, %cst_137 [1] : vector<4x128xf32> to vector<4xf32>
    %135 = vector.shape_cast %134 : vector<4xf32> to vector<4x1xf32>
    %136 = arith.addf %103, %135 : vector<4x1xf32>
    %c0_138 = arith.constant 0 : index
    %c0_139 = arith.constant 0 : index
    %c0_140 = arith.constant 0 : index
    %137 = vector.load %arg5[%c0_138, %c0_139, %c0_140] : memref<1x4x2xf32, #tpu.memory_space<vmem>>, vector<1x4x1xf32>
    %138 = vector.shape_cast %137 : vector<1x4x1xf32> to vector<4x1xf32>
    %139 = arith.addf %138, %132 : vector<4x1xf32>
    %c0_141 = arith.constant 0 : index
    %c0_142 = arith.constant 0 : index
    %c0_143 = arith.constant 0 : index
    %140 = vector.load %arg5[%c0_141, %c0_142, %c0_143] : memref<1x4x2xf32, #tpu.memory_space<vmem>>, vector<1x4x1xf32>
    %141 = vector.shape_cast %140 : vector<1x4x1xf32> to vector<4x1xf32>
    %142 = vector.shape_cast %139 : vector<4x1xf32> to vector<1x4x1xf32>
    tpu.vector_store %arg5[%c0_141, %c0_142, %c0_143], %142 {strides = array<i32>} : memref<1x4x2xf32, #tpu.memory_space<vmem>>, vector<1x4x1xf32>,
    %c0_144 = arith.constant 0 : index
    %c0_145 = arith.constant 0 : index
    %c1_146 = arith.constant 1 : index
    %143 = vector.load %arg5[%c0_144, %c0_145, %c1_146] : memref<1x4x2xf32, #tpu.memory_space<vmem>>, vector<1x4x1xf32>
    %144 = vector.shape_cast %143 : vector<1x4x1xf32> to vector<4x1xf32>
    %145 = arith.addf %144, %136 : vector<4x1xf32>
    %c0_147 = arith.constant 0 : index
    %c0_148 = arith.constant 0 : index
    %c1_149 = arith.constant 1 : index
    %146 = vector.load %arg5[%c0_147, %c0_148, %c1_149] : memref<1x4x2xf32, #tpu.memory_space<vmem>>, vector<1x4x1xf32>
    %147 = vector.shape_cast %146 : vector<1x4x1xf32> to vector<4x1xf32>
    %148 = vector.shape_cast %145 : vector<4x1xf32> to vector<1x4x1xf32>
    tpu.vector_store %arg5[%c0_147, %c0_148, %c1_149], %148 {strides = array<i32>} : memref<1x4x2xf32, #tpu.memory_space<vmem>>, vector<1x4x1xf32>,
    return
  }
  func.func @transform_0(%arg0: i32, %arg1: i32) -> (i32, i32, i32, i32) {
    %c0_i32 = arith.constant 0 : i32
    %c0_i32_0 = arith.constant 0 : i32
    %c0_i32_1 = arith.constant 0 : i32
    return %arg0, %c0_i32, %c0_i32_0, %arg1 : i32, i32, i32, i32
  }
  func.func @transform_1(%arg0: i32, %arg1: i32) -> (i32, i32, i32) {
    %c0_i32 = arith.constant 0 : i32
    %c0_i32_0 = arith.constant 0 : i32
    %c0_i32_1 = arith.constant 0 : i32
    %c0_i32_2 = arith.constant 0 : i32
    return %c0_i32, %c0_i32_0, %c0_i32_1 : i32, i32, i32
  }
  func.func @transform_2(%arg0: i32, %arg1: i32) -> (i32, i32, i32, i32) {
    %c0_i32 = arith.constant 0 : i32
    %c0_i32_0 = arith.constant 0 : i32
    %c0_i32_1 = arith.constant 0 : i32
    return %arg0, %c0_i32, %c0_i32_0, %arg1 : i32, i32, i32, i32
  }
  func.func @transform_3(%arg0: i32, %arg1: i32) -> (i32, i32, i32) {
    %c0_i32 = arith.constant 0 : i32
    %c0_i32_0 = arith.constant 0 : i32
    %c0_i32_1 = arith.constant 0 : i32
    return %arg0, %c0_i32, %c0_i32_0 : i32, i32, i32
  }
}

</mosaic_0001>

<llo_original>
// kernel: unet_up_forward.3
$region0: #{unet_up_forward.3}
  #allocation0 [shape = 'u32[]', space=smem, size = 0x4, offset = 0x4, fixed_abs, tag = 'smem constant byte address 0x4 - core index']
  #allocation1 [shape = 'u32[144,128]{1,0:T(1,128)}', space=vmem, size = 0x12000, scoped, tag = 'internal scratch']
  %s0 = inlined_call_operand.vmem [shape: f32[2,4,4,256], index: 0, kind: input, shape index: {}]
  %s1 = inlined_call_operand.vmem [shape: f32[2,4,2], index: 1, kind: input, shape index: {}]
  %s2 = inlined_call_operand.vmem [shape: f32[2,4,4,256], index: 2, kind: output, shape index: {}]
  %s3 = sld [smem:[#allocation0]]
  $region119: #{unet_up_forward.3} parent=0
    _
  %s5 = ssub.s32 1, %s3
  %s6 = scalar_select 0, %s5, %s3
  $region1: #{unet_up_forward.3} parent=0
    #allocation2 [shape = 'u8[16384]{0}', space=vmem, size = 0x4000, scoped, tag = 'input window, operand 0']
    #allocation3 [shape = 'u8[16384]{0}', space=vmem, size = 0x4000, scoped, tag = 'output window, operand 0']
    loop: start=0, step=1, limit=6
    $region2: #{unet_up_forward.3} parent=1 // loop_pre_header
      _
    $region3: #{unet_up_forward.3} parent=1 // loop_header
      %s8 = sphi 0, %s12
      %p9 = scmp.ge.s32.totalorder %s8, 6
      %s15 = sphi 0, %s27
      %s16 = sphi 0, %s23
      %s17 = sphi 0, %s15
      %s18 = sphi 0, %s16
      %s19 = sphi 0, %s17
      %s20 = sphi 0, %s18
      %s32 = sphi 0, %s34
      %s35 = sphi 0, %s32
      %s36 = sphi 0, %s35
      %s52 = sphi 0, %s36
      %s58 = sphi 0, %s60
      %s61 = sphi 0, %s58
      %s62 = sphi 0, %s61
      %s78 = sphi 0, %s62
      %s86 = sphi 0, %s88
      %s89 = sphi 0, %s86
      %s90 = sphi 0, %s89
      %s106 = sphi 0, %s90
    $region4: #{unet_up_forward.3} parent=1 // loop_header_branch
      %11 = sbr.rel (%p9) target = $region8
    $region5: #{unet_up_forward.3} parent=1 // loop_body
      %s13 = ssub.s32 %s8, 1
      %s14 = ssub.s32 %s8, 2
      %s21 = sadd.s32 1, %s16
      %p22 = scmp.ge.s32.totalorder %s21, 2
      %s23 = scalar_select %p22, 0, %s21
      %s24 = sadd.s32 1, %s15
      %s25 = scalar_select %p22, %s24, %s15
      %p26 = scmp.ge.s32.totalorder %s25, 2
      %s27 = scalar_select %p26, 0, %s25
      %s28 = ssub.s32 %s15, %s27
      %s29 = ssub.s32 %s16, %s23
      %s30 = sor.u32 %s28, %s29
      %p31 = scmp.eq.s32.totalorder %s30, 0
      %s33 = sadd.s32 %s32, 1
      %s34 = scalar_select %p31, %s32, %s33
      %p37 = pneg %p31
      %p38 = scmp.eq.s32.totalorder %s8, 3
      %p39 = por %p37, %p38
      %p40 = scmp.ne.s32.totalorder %s32, %s35
      %p41 = scmp.eq.s32.totalorder %s8, 0
      %p42 = por %p40, %p41
      %p43 = scmp.ne.s32.totalorder %s32, %s35
      %p44 = scmp.eq.s32.totalorder %s13, 3
      %p45 = por %p43, %p44
      %p46 = scmp.ne.s32.totalorder %s35, %s36
      %p47 = scmp.eq.s32.totalorder %s13, 0
      %p48 = por %p46, %p47
      %p49 = scmp.ne.s32.totalorder %s35, %s36
      %p50 = scmp.eq.s32.totalorder %s14, 3
      %p51 = por %p49, %p50
      %p53 = scmp.ne.s32.totalorder %s36, %s52
      %p54 = scmp.eq.s32.totalorder %s14, 0
      %p55 = por %p53, %p54
      %s56 = ssub.s32 %s15, %s27
      %p57 = scmp.eq.s32.totalorder %s56, 0
      %s59 = sadd.s32 %s58, 1
      %s60 = scalar_select %p57, %s58, %s59
      %p63 = pneg %p57
      %p64 = scmp.eq.s32.totalorder %s8, 3
      %p65 = por %p63, %p64
      %p66 = scmp.ne.s32.totalorder %s58, %s61
      %p67 = scmp.eq.s32.totalorder %s8, 0
      %p68 = por %p66, %p67
      %p69 = scmp.ne.s32.totalorder %s58, %s61
      %p70 = scmp.eq.s32.totalorder %s13, 3
      %p71 = por %p69, %p70
      %p72 = scmp.ne.s32.totalorder %s61, %s62
      %p73 = scmp.eq.s32.totalorder %s13, 0
      %p74 = por %p72, %p73
      %p75 = scmp.ne.s32.totalorder %s61, %s62
      %p76 = scmp.eq.s32.totalorder %s14, 3
      %p77 = por %p75, %p76
      %p79 = scmp.ne.s32.totalorder %s62, %s78
      %p80 = scmp.eq.s32.totalorder %s14, 0
      %p81 = por %p79, %p80
      %s82 = ssub.s32 %s15, %s27
      %s83 = ssub.s32 %s16, %s23
      %s84 = sor.u32 %s82, %s83
      %p85 = scmp.eq.s32.totalorder %s84, 0
      %s87 = sadd.s32 %s86, 1
      %s88 = scalar_select %p85, %s86, %s87
      %p91 = pneg %p85
      %p92 = scmp.eq.s32.totalorder %s8, 3
      %p93 = por %p91, %p92
      %p94 = scmp.ne.s32.totalorder %s86, %s89
      %p95 = scmp.eq.s32.totalorder %s8, 0
      %p96 = por %p94, %p95
      %p97 = scmp.ne.s32.totalorder %s86, %s89
      %p98 = scmp.eq.s32.totalorder %s13, 3
      %p99 = por %p97, %p98
      %p100 = scmp.ne.s32.totalorder %s89, %s90
      %p101 = scmp.eq.s32.totalorder %s13, 0
      %p102 = por %p100, %p101
      %p103 = scmp.ne.s32.totalorder %s89, %s90
      %p104 = scmp.eq.s32.totalorder %s14, 3
      %p105 = por %p103, %p104
      %p107 = scmp.ne.s32.totalorder %s90, %s106
      %p108 = scmp.eq.s32.totalorder %s14, 0
      %p109 = por %p107, %p108
      %p110 = scmp.le.s32.totalorder 1, %s8
      %p111 = scmp.lt.s32.totalorder %s8, 5
      %p112 = pnand %p110, %p111
      %p113 = pneg %p112
      // Predicated region
      $region9: #{unet_up_forward.3} parent=5 // pred_check
        _
      $region10: #{unet_up_forward.3} parent=5 // pred_check_branch
        %115 = sbr.rel (%p112) target = $region12
      $region11: #{unet_up_forward.3} parent=5 // pred_region
        %s116 = ssub.s32 %s8, 1
      $region12: #{unet_up_forward.3} parent=5 // pred_fallthru
        _
      %p117 = scmp.lt.s32.totalorder %s8, 4
      // Predicated region
      $region13: #{unet_up_forward.3} parent=5 // pred_check
        %p118 = pneg %p117
      $region14: #{unet_up_forward.3} parent=5 // pred_check_branch
        %120 = sbr.rel (%p118) target = $region16
      $region15: #{unet_up_forward.3} parent=5 // pred_region
        // Predicated region
        $region17: #{unet_up_forward.3} parent=15 // pred_check
          %p121 = pneg %p42
        $region18: #{unet_up_forward.3} parent=15 // pred_check_branch
          %123 = sbr.rel (%p121) target = $region20
        $region19: #{unet_up_forward.3} parent=15 // pred_region
          %s124 = sand.u32 %s32, 1
          %s125 = sand.u32 %s32, 1
          %s126 = smul.addr %s125, 16
          %s127 = scalar_lea.vmem [#allocation2], %s126
          %s128 = smul.addr %s15, 8
          %s129 = sadd.s32 %s16, %s128
          %s130 = smul.addr %s129, 4
          %s131 = scalar_lea.vmem %s0, %s130
          // Predicated region
          $region21: #{unet_up_forward.3} parent=19 // pred_check
            _
          $region22: #{unet_up_forward.3} parent=19 // pred_check_branch
            %133 = sbr.rel (0) target = $region24
          $region23: #{unet_up_forward.3} parent=19 // pred_region
            // Predicated region
            $region25: #{unet_up_forward.3} parent=23 // pred_check
              _
            $region26: #{unet_up_forward.3} parent=23 // pred_check_branch
              %135 = sbr.rel target = $region28
            $region27: #{unet_up_forward.3} parent=23 // pred_region
              // Predicated region
              $region40: #{unet_up_forward.3} parent=27 // pred_check
                _
              $region41: #{unet_up_forward.3} parent=27 // pred_check_branch
                %156 = sbr.rel (0) target = $region43
              $region42: #{unet_up_forward.3} parent=27 // pred_region
                loop: start=0, step=1, limit=1
                $region44: #{unet_up_forward.3} parent=42 // loop_pre_header
                  _
                $region45: #{unet_up_forward.3} parent=42 // loop_header
                  %s158 = sphi 0, %s162
                  %p159 = scmp.ge.s32.totalorder %s158, 1
                  %s163 = sphi %s131, %s131
                  %s164 = sphi %s127, %s127
                $region46: #{unet_up_forward.3} parent=42 // loop_header_branch
                  %161 = sbr.rel (%p159) target = $region50
                $region47: #{unet_up_forward.3} parent=42 // loop_body
                  _
                $region48: #{unet_up_forward.3} parent=42 // loop_footer
                  %s162 = sadd.s32 1, %s158
                $region49: #{unet_up_forward.3} parent=42 // loop_footer_branch
                  %157 = sbr.rel target = $region45
                $region50: #{unet_up_forward.3} parent=42 // loop_exit
                  _
                loop: start=0, step=1, limit=1
                $region51: #{unet_up_forward.3} parent=42 // loop_pre_header
                  _
                $region52: #{unet_up_forward.3} parent=42 // loop_header
                  %s167 = sphi 0, %s171
                  %p168 = scmp.ge.s32.totalorder %s167, 1
                  %s172 = sphi %s131, %s131
                  %s173 = sphi %s127, %s127
                $region53: #{unet_up_forward.3} parent=42 // loop_header_branch
                  %170 = sbr.rel (%p168) target = $region57
                $region54: #{unet_up_forward.3} parent=42 // loop_body
                  %v174 = vld [vmem:[%s172] sm:$0xf]
                  %175 = vst [vmem:[%s173] sm:$0xf] %v174
                  %v176 = vld [vmem:[%s172 + $0x8] sm:$0xf]
                  %177 = vst [vmem:[%s173 + $0x4] sm:$0xf] %v176
                  %v178 = vld [vmem:[%s172 + $0x10] sm:$0xf]
                  %179 = vst [vmem:[%s173 + $0x8] sm:$0xf] %v178
                  %v180 = vld [vmem:[%s172 + $0x18] sm:$0xf]
                  %181 = vst [vmem:[%s173 + $0xc] sm:$0xf] %v180
                $region55: #{unet_up_forward.3} parent=42 // loop_footer
                  %s171 = sadd.s32 1, %s167
                $region56: #{unet_up_forward.3} parent=42 // loop_footer_branch
                  %166 = sbr.rel target = $region52
                $region57: #{unet_up_forward.3} parent=42 // loop_exit
                  _
              $region43: #{unet_up_forward.3} parent=27 // pred_fallthru
                _
            $region28: #{unet_up_forward.3} parent=23 // pred_fallthru
              _
            // Predicated region
            $region29: #{unet_up_forward.3} parent=23 // pred_check
              _
            $region30: #{unet_up_forward.3} parent=23 // pred_check_branch
              %137 = sbr.rel (0) target = $region32
            $region31: #{unet_up_forward.3} parent=23 // pred_region
              loop: start=0, step=1, limit=1
              $region33: #{unet_up_forward.3} parent=31 // loop_pre_header
                _
              $region34: #{unet_up_forward.3} parent=31 // loop_header
                %s140 = sphi 0, %s144
                %p141 = scmp.ge.s32.totalorder %s140, 1
                %s145 = sphi %s131, %s131
                %s146 = sphi %s127, %s127
              $region35: #{unet_up_forward.3} parent=31 // loop_header_branch
                %143 = sbr.rel (%p141) target = $region39
              $region36: #{unet_up_forward.3} parent=31 // loop_body
                %v147 = vld [vmem:[%s145] sm:$0xf]
                %148 = vst [vmem:[%s146] sm:$0xf] %v147
                %v149 = vld [vmem:[%s145 + $0x8] sm:$0xf]
                %150 = vst [vmem:[%s146 + $0x4] sm:$0xf] %v149
                %v151 = vld [vmem:[%s145 + $0x10] sm:$0xf]
                %152 = vst [vmem:[%s146 + $0x8] sm:$0xf] %v151
                %v153 = vld [vmem:[%s145 + $0x18] sm:$0xf]
                %154 = vst [vmem:[%s146 + $0xc] sm:$0xf] %v153
              $region37: #{unet_up_forward.3} parent=31 // loop_footer
                %s144 = sadd.s32 1, %s140
              $region38: #{unet_up_forward.3} parent=31 // loop_footer_branch
                %139 = sbr.rel target = $region34
              $region39: #{unet_up_forward.3} parent=31 // loop_exit
                _
            $region32: #{unet_up_forward.3} parent=23 // pred_fallthru
              _
          $region24: #{unet_up_forward.3} parent=19 // pred_fallthru
            _
          %182 = vnop
        $region20: #{unet_up_forward.3} parent=15 // pred_fallthru
          _
        // Predicated region
        $region58: #{unet_up_forward.3} parent=15 // pred_check
          %p183 = pneg %p68
        $region59: #{unet_up_forward.3} parent=15 // pred_check_branch
          %185 = sbr.rel (%p183) target = $region61
        $region60: #{unet_up_forward.3} parent=15 // pred_region
          %p186 = scmp.lt.s32.totalorder %s15, 1
          %s187 = scalar_select %p186, %s15, 1
          %s188 = smul.addr %s187, 4
          %s189 = scalar_lea.vmem %s1, %s188
        $region61: #{unet_up_forward.3} parent=15 // pred_fallthru
          _
      $region16: #{unet_up_forward.3} parent=5 // pred_fallthru
        _
      %p190 = scmp.le.s32.totalorder 1, %s8
      %p191 = scmp.lt.s32.totalorder %s8, 5
      %p192 = pnand %p190, %p191
      %p193 = pneg %p192
      // Predicated region
      $region62: #{unet_up_forward.3} parent=5 // pred_check
        _
      $region63: #{unet_up_forward.3} parent=5 // pred_check_branch
        %195 = sbr.rel (%p192) target = $region65
      $region64: #{unet_up_forward.3} parent=5 // pred_region
        %s196 = ssub.s32 %s8, 1
        %s197 = sand.u32 %s35, 1
        %s198 = sand.u32 %s35, 1
        %s199 = smul.addr %s198, 16
        %s200 = scalar_lea.vmem [#allocation2], %s199
        // Predicated region
        $region66: #{unet_up_forward.3} parent=64 // pred_check
          %p201 = pneg %p48
        $region67: #{unet_up_forward.3} parent=64 // pred_check_branch
          %203 = sbr.rel (%p201) target = $region69
        $region68: #{unet_up_forward.3} parent=64 // pred_region
          _
        $region69: #{unet_up_forward.3} parent=64 // pred_fallthru
          _
        %s204 = sand.u32 %s35, 1
        %s205 = sand.u32 %s35, 1
        %s206 = smul.addr %s205, 16
        %s207 = scalar_lea.vmem [#allocation2], %s206
        %p208 = pneg %p48
        %p209 = pneg %p45
        %p210 = scmp.lt.s32.totalorder %s17, 1
        %s211 = scalar_select %p210, %s17, 1
        %s212 = smul.addr %s211, 4
        %s213 = scalar_lea.vmem %s1, %s212
        %p214 = pneg %p74
        %p215 = pneg %p71
        %p216 = pneg %p102
        %p217 = pneg %p99
        %s218 = sand.u32 %s89, 1
        %s219 = sand.u32 %s89, 1
        %s220 = smul.addr %s219, 16
        %s221 = scalar_lea.vmem [#allocation3], %s220
        %p222 = scmp.lt.s32.totalorder %s17, 1
        %s223 = scalar_select %p222, %s17, 1
        %s224 = smul.addr %s223, 4
        %s225 = scalar_lea.vmem %s1, %s224
        %v226 = vld [vmem:[%s225] sm:$0xf]
        %v227 = vmul.f32 %v226, 0.0009765625
        %v228 = vmul.f32 %v227, %v227
        %230 = vrot.lane.b32.xlu0 %v228, 1
        %v231 = vpop.permute.xlu0 %230
        %v233 = vsub.f32 %v227, %v231
        %v234 = vmax.f32 %v233, 0.0
        %v235 = vadd.f32 %v234, 1e-05
        %v236 = vrsqrt.pop %v235
        %v237 = vsub.f32 0.0, %v227
        %239 = vrot.lane.b32.xlu0 %v236, 127
        %v240 = vpop.permute.xlu0 %239
        %v242 = vmul.f32 %v237, %v240
        %v243 = vld [vmem:[%s200] sm:$0xf]
        %244 = vset.pattern.permute.xlu0 1
        %245 = vperm.xlu0 %244, %v236
        %v246 = vpop.permute.xlu0 %245
        %v248 = vmul.f32 %v243, %v246
        %250 = vset.pattern.permute.xlu0 0
        %251 = vperm.xlu0 %250, %v242
        %v252 = vpop.permute.xlu0 %251
        %v254 = vadd.f32 %v248, %v252
        %v255 = vmax.f32 %v254, 0.0
        %256 = vst [vmem:[%s221] sm:$0xf] %v255
        %s257 = scalar_lea.vmem %s200, 4 [#allocation2]
        %v258 = vld [vmem:[%s257] sm:$0xf]
        %v259 = vmul.f32 %v258, %v246
        %v260 = vadd.f32 %v259, %v252
        %v261 = vmax.f32 %v260, 0.0
        %s262 = scalar_lea.vmem %s221, 4 [#allocation3]
        %263 = vst [vmem:[%s262] sm:$0xf] %v261
        %s264 = scalar_lea.vmem %s200, 8 [#allocation2]
        %v265 = vld [vmem:[%s264] sm:$0xf]
        %v266 = vmul.f32 %v265, %v246
        %v267 = vadd.f32 %v266, %v252
        %v268 = vmax.f32 %v267, 0.0
        %s269 = scalar_lea.vmem %s221, 8 [#allocation3]
        %270 = vst [vmem:[%s269] sm:$0xf] %v268
        %s271 = scalar_lea.vmem %s200, 12 [#allocation2]
        %v272 = vld [vmem:[%s271] sm:$0xf]
        %v273 = vmul.f32 %v272, %v246
        %v274 = vadd.f32 %v273, %v252
        %v275 = vmax.f32 %v274, 0.0
        %s276 = scalar_lea.vmem %s221, 12 [#allocation3]
        %277 = vst [vmem:[%s276] sm:$0xf] %v275
        %s278 = sand.u32 %s89, 1
        %s279 = sand.u32 %s89, 1
        %s280 = smul.addr %s279, 16
        %s281 = scalar_lea.vmem [#allocation3], %s280
        // Predicated region
        $region70: #{unet_up_forward.3} parent=64 // pred_check
          %p282 = pneg %p99
        $region71: #{unet_up_forward.3} parent=64 // pred_check_branch
          %284 = sbr.rel (%p282) target = $region73
        $region72: #{unet_up_forward.3} parent=64 // pred_region
          %s285 = smul.addr %s17, 8
          %s286 = sadd.s32 %s18, %s285
          %s287 = smul.addr %s286, 4
          %s288 = scalar_lea.vmem %s2, %s287
          // Predicated region
          $region74: #{unet_up_forward.3} parent=72 // pred_check
            _
          $region75: #{unet_up_forward.3} parent=72 // pred_check_branch
            %290 = sbr.rel (0) target = $region77
          $region76: #{unet_up_forward.3} parent=72 // pred_region
            // Predicated region
            $region78: #{unet_up_forward.3} parent=76 // pred_check
              _
            $region79: #{unet_up_forward.3} parent=76 // pred_check_branch
              %292 = sbr.rel target = $region81
            $region80: #{unet_up_forward.3} parent=76 // pred_region
              // Predicated region
              $region93: #{unet_up_forward.3} parent=80 // pred_check
                _
              $region94: #{unet_up_forward.3} parent=80 // pred_check_branch
                %313 = sbr.rel (0) target = $region96
              $region95: #{unet_up_forward.3} parent=80 // pred_region
                loop: start=0, step=1, limit=1
                $region97: #{unet_up_forward.3} parent=95 // loop_pre_header
                  _
                $region98: #{unet_up_forward.3} parent=95 // loop_header
                  %s315 = sphi 0, %s319
                  %p316 = scmp.ge.s32.totalorder %s315, 1
                  %s320 = sphi %s281, %s281
                  %s321 = sphi %s288, %s288
                $region99: #{unet_up_forward.3} parent=95 // loop_header_branch
                  %318 = sbr.rel (%p316) target = $region103
                $region100: #{unet_up_forward.3} parent=95 // loop_body
                  _
                $region101: #{unet_up_forward.3} parent=95 // loop_footer
                  %s319 = sadd.s32 1, %s315
                $region102: #{unet_up_forward.3} parent=95 // loop_footer_branch
                  %314 = sbr.rel target = $region98
                $region103: #{unet_up_forward.3} parent=95 // loop_exit
                  _
                loop: start=0, step=1, limit=1
                $region104: #{unet_up_forward.3} parent=95 // loop_pre_header
                  _
                $region105: #{unet_up_forward.3} parent=95 // loop_header
                  %s324 = sphi 0, %s328
                  %p325 = scmp.ge.s32.totalorder %s324, 1
                  %s329 = sphi %s281, %s281
                  %s330 = sphi %s288, %s288
                $region106: #{unet_up_forward.3} parent=95 // loop_header_branch
                  %327 = sbr.rel (%p325) target = $region110
                $region107: #{unet_up_forward.3} parent=95 // loop_body
                  %v331 = vld [vmem:[%s329] sm:$0xf]
                  %332 = vst [vmem:[%s330] sm:$0xf] %v331
                  %v333 = vld [vmem:[%s329 + $0x4] sm:$0xf]
                  %334 = vst [vmem:[%s330 + $0x8] sm:$0xf] %v333
                  %v335 = vld [vmem:[%s329 + $0x8] sm:$0xf]
                  %336 = vst [vmem:[%s330 + $0x10] sm:$0xf] %v335
                  %v337 = vld [vmem:[%s329 + $0xc] sm:$0xf]
                  %338 = vst [vmem:[%s330 + $0x18] sm:$0xf] %v337
                $region108: #{unet_up_forward.3} parent=95 // loop_footer
                  %s328 = sadd.s32 1, %s324
                $region109: #{unet_up_forward.3} parent=95 // loop_footer_branch
                  %323 = sbr.rel target = $region105
                $region110: #{unet_up_forward.3} parent=95 // loop_exit
                  _
              $region96: #{unet_up_forward.3} parent=80 // pred_fallthru
                _
            $region81: #{unet_up_forward.3} parent=76 // pred_fallthru
              _
            // Predicated region
            $region82: #{unet_up_forward.3} parent=76 // pred_check
              _
            $region83: #{unet_up_forward.3} parent=76 // pred_check_branch
              %294 = sbr.rel (0) target = $region85
            $region84: #{unet_up_forward.3} parent=76 // pred_region
              loop: start=0, step=1, limit=1
              $region86: #{unet_up_forward.3} parent=84 // loop_pre_header
                _
              $region87: #{unet_up_forward.3} parent=84 // loop_header
                %s297 = sphi 0, %s301
                %p298 = scmp.ge.s32.totalorder %s297, 1
                %s302 = sphi %s281, %s281
                %s303 = sphi %s288, %s288
              $region88: #{unet_up_forward.3} parent=84 // loop_header_branch
                %300 = sbr.rel (%p298) target = $region92
              $region89: #{unet_up_forward.3} parent=84 // loop_body
                %v304 = vld [vmem:[%s302] sm:$0xf]
                %305 = vst [vmem:[%s303] sm:$0xf] %v304
                %v306 = vld [vmem:[%s302 + $0x4] sm:$0xf]
                %307 = vst [vmem:[%s303 + $0x8] sm:$0xf] %v306
                %v308 = vld [vmem:[%s302 + $0x8] sm:$0xf]
                %309 = vst [vmem:[%s303 + $0x10] sm:$0xf] %v308
                %v310 = vld [vmem:[%s302 + $0xc] sm:$0xf]
                %311 = vst [vmem:[%s303 + $0x18] sm:$0xf] %v310
              $region90: #{unet_up_forward.3} parent=84 // loop_footer
                %s301 = sadd.s32 1, %s297
              $region91: #{unet_up_forward.3} parent=84 // loop_footer_branch
                %296 = sbr.rel target = $region87
              $region92: #{unet_up_forward.3} parent=84 // loop_exit
                _
            $region85: #{unet_up_forward.3} parent=76 // pred_fallthru
              _
          $region77: #{unet_up_forward.3} parent=72 // pred_fallthru
            _
          %339 = vnop
        $region73: #{unet_up_forward.3} parent=64 // pred_fallthru
          _
      $region65: #{unet_up_forward.3} parent=5 // pred_fallthru
        _
      %p340 = scmp.le.s32.totalorder 2, %s8
      // Predicated region
      $region111: #{unet_up_forward.3} parent=5 // pred_check
        %p341 = pneg %p340
      $region112: #{unet_up_forward.3} parent=5 // pred_check_branch
        %343 = sbr.rel (%p341) target = $region114
      $region113: #{unet_up_forward.3} parent=5 // pred_region
        %s344 = ssub.s32 %s8, 2
        // Predicated region
        $region115: #{unet_up_forward.3} parent=113 // pred_check
          %p345 = pneg %p105
        $region116: #{unet_up_forward.3} parent=113 // pred_check_branch
          %347 = sbr.rel (%p345) target = $region118
        $region117: #{unet_up_forward.3} parent=113 // pred_region
          %s348 = sand.u32 %s90, 1
          %s349 = sand.u32 %s90, 1
          %s350 = smul.addr %s349, 16
          %s351 = scalar_lea.vmem [#allocation3], %s350
        $region118: #{unet_up_forward.3} parent=113 // pred_fallthru
          _
      $region114: #{unet_up_forward.3} parent=5 // pred_fallthru
        _
    $region6: #{unet_up_forward.3} parent=1 // loop_footer
      %s12 = sadd.s32 1, %s8
    $region7: #{unet_up_forward.3} parent=1 // loop_footer_branch
      %7 = sbr.rel target = $region3
    $region8: #{unet_up_forward.3} parent=1 // loop_exit
      _

// kernel: unet_up_forward.2
$region0: #{unet_up_forward.2}
  #allocation0 [shape = 'u32[]', space=smem, size = 0x4, offset = 0x4, fixed_abs, tag = 'smem constant byte address 0x4 - core index']
  #allocation1 [shape = 'u32[144,128]{1,0:T(1,128)}', space=vmem, size = 0x12000, scoped, tag = 'internal scratch']
  %s0 = inlined_call_operand.vmem [shape: f32[2,9,4,256], index: 0, kind: input, shape index: {}]
  %s1 = inlined_call_operand.vmem [shape: f32[16,4,4], index: 1, kind: input, shape index: {}]
  %s2 = inlined_call_operand.vmem [shape: f32[2,4,4,256], index: 2, kind: output, shape index: {0}]
  %s3 = inlined_call_operand.vmem [shape: f32[2,4,2], index: 3, kind: output, shape index: {1}]
  %4 = xla_tuple %s2, %s3
  %s5 = sld [smem:[#allocation0]]
  $region131: #{unet_up_forward.2} parent=0
    _
  %s7 = ssub.s32 1, %s5
  %s8 = scalar_select 0, %s7, %s5
  $region1: #{unet_up_forward.2} parent=0
    #allocation2 [shape = 'u8[36864]{0}', space=vmem, size = 0x9000, scoped, tag = 'input window, operand 0']
    #allocation3 [shape = 'u8[16384]{0}', space=vmem, size = 0x4000, scoped, tag = 'output window, operand 0']
    loop: start=0, step=1, limit=6
    $region2: #{unet_up_forward.2} parent=1 // loop_pre_header
      _
    $region3: #{unet_up_forward.2} parent=1 // loop_header
      %s10 = sphi 0, %s14
      %p11 = scmp.ge.s32.totalorder %s10, 6
      %s17 = sphi 0, %s29
      %s18 = sphi 0, %s25
      %s19 = sphi 0, %s17
      %s20 = sphi 0, %s18
      %s21 = sphi 0, %s19
      %s22 = sphi 0, %s20
      %s34 = sphi 0, %s36
      %s37 = sphi 0, %s34
      %s38 = sphi 0, %s37
      %s54 = sphi 0, %s38
      %s58 = sphi 0, %s58
      %s60 = sphi 0, %s58
      %s61 = sphi 0, %s60
      %s75 = sphi 0, %s61
      %s83 = sphi 0, %s85
      %s86 = sphi 0, %s83
      %s87 = sphi 0, %s86
      %s103 = sphi 0, %s87
      %s109 = sphi 0, %s111
      %s112 = sphi 0, %s109
      %s113 = sphi 0, %s112
      %s129 = sphi 0, %s113
    $region4: #{unet_up_forward.2} parent=1 // loop_header_branch
      %13 = sbr.rel (%p11) target = $region8
    $region5: #{unet_up_forward.2} parent=1 // loop_body
      %s15 = ssub.s32 %s10, 1
      %s16 = ssub.s32 %s10, 2
      %s23 = sadd.s32 1, %s18
      %p24 = scmp.ge.s32.totalorder %s23, 2
      %s25 = scalar_select %p24, 0, %s23
      %s26 = sadd.s32 1, %s17
      %s27 = scalar_select %p24, %s26, %s17
      %p28 = scmp.ge.s32.totalorder %s27, 2
      %s29 = scalar_select %p28, 0, %s27
      %s30 = ssub.s32 %s17, %s29
      %s31 = ssub.s32 %s18, %s25
      %s32 = sor.u32 %s30, %s31
      %p33 = scmp.eq.s32.totalorder %s32, 0
      %s35 = sadd.s32 %s34, 1
      %s36 = scalar_select %p33, %s34, %s35
      %p39 = pneg %p33
      %p40 = scmp.eq.s32.totalorder %s10, 3
      %p41 = por %p39, %p40
      %p42 = scmp.ne.s32.totalorder %s34, %s37
      %p43 = scmp.eq.s32.totalorder %s10, 0
      %p44 = por %p42, %p43
      %p45 = scmp.ne.s32.totalorder %s34, %s37
      %p46 = scmp.eq.s32.totalorder %s15, 3
      %p47 = por %p45, %p46
      %p48 = scmp.ne.s32.totalorder %s37, %s38
      %p49 = scmp.eq.s32.totalorder %s15, 0
      %p50 = por %p48, %p49
      %p51 = scmp.ne.s32.totalorder %s37, %s38
      %p52 = scmp.eq.s32.totalorder %s16, 3
      %p53 = por %p51, %p52
      %p55 = scmp.ne.s32.totalorder %s38, %s54
      %p56 = scmp.eq.s32.totalorder %s16, 0
      %p57 = por %p55, %p56
      %s59 = sadd.s32 %s58, 1
      %p62 = scmp.eq.s32.totalorder %s10, 3
      %p63 = scmp.ne.s32.totalorder %s58, %s60
      %p64 = scmp.eq.s32.totalorder %s10, 0
      %p65 = por %p63, %p64
      %p66 = scmp.ne.s32.totalorder %s58, %s60
      %p67 = scmp.eq.s32.totalorder %s15, 3
      %p68 = por %p66, %p67
      %p69 = scmp.ne.s32.totalorder %s60, %s61
      %p70 = scmp.eq.s32.totalorder %s15, 0
      %p71 = por %p69, %p70
      %p72 = scmp.ne.s32.totalorder %s60, %s61
      %p73 = scmp.eq.s32.totalorder %s16, 3
      %p74 = por %p72, %p73
      %p76 = scmp.ne.s32.totalorder %s61, %s75
      %p77 = scmp.eq.s32.totalorder %s16, 0
      %p78 = por %p76, %p77
      %s79 = ssub.s32 %s17, %s29
      %s80 = ssub.s32 %s18, %s25
      %s81 = sor.u32 %s79, %s80
      %p82 = scmp.eq.s32.totalorder %s81, 0
      %s84 = sadd.s32 %s83, 1
      %s85 = scalar_select %p82, %s83, %s84
      %p88 = pneg %p82
      %p89 = scmp.eq.s32.totalorder %s10, 3
      %p90 = por %p88, %p89
      %p91 = scmp.ne.s32.totalorder %s83, %s86
      %p92 = scmp.eq.s32.totalorder %s10, 0
      %p93 = por %p91, %p92
      %p94 = scmp.ne.s32.totalorder %s83, %s86
      %p95 = scmp.eq.s32.totalorder %s15, 3
      %p96 = por %p94, %p95
      %p97 = scmp.ne.s32.totalorder %s86, %s87
      %p98 = scmp.eq.s32.totalorder %s15, 0
      %p99 = por %p97, %p98
      %p100 = scmp.ne.s32.totalorder %s86, %s87
      %p101 = scmp.eq.s32.totalorder %s16, 3
      %p102 = por %p100, %p101
      %p104 = scmp.ne.s32.totalorder %s87, %s103
      %p105 = scmp.eq.s32.totalorder %s16, 0
      %p106 = por %p104, %p105
      %s107 = ssub.s32 %s17, %s29
      %p108 = scmp.eq.s32.totalorder %s107, 0
      %s110 = sadd.s32 %s109, 1
      %s111 = scalar_select %p108, %s109, %s110
      %p114 = pneg %p108
      %p115 = scmp.eq.s32.totalorder %s10, 3
      %p116 = por %p114, %p115
      %p117 = scmp.ne.s32.totalorder %s109, %s112
      %p118 = scmp.eq.s32.totalorder %s10, 0
      %p119 = por %p117, %p118
      %p120 = scmp.ne.s32.totalorder %s109, %s112
      %p121 = scmp.eq.s32.totalorder %s15, 3
      %p122 = por %p120, %p121
      %p123 = scmp.ne.s32.totalorder %s112, %s113
      %p124 = scmp.eq.s32.totalorder %s15, 0
      %p125 = por %p123, %p124
      %p126 = scmp.ne.s32.totalorder %s112, %s113
      %p127 = scmp.eq.s32.totalorder %s16, 3
      %p128 = por %p126, %p127
      %p130 = scmp.ne.s32.totalorder %s113, %s129
      %p131 = scmp.eq.s32.totalorder %s16, 0
      %p132 = por %p130, %p131
      %p133 = scmp.le.s32.totalorder 1, %s10
      %p134 = scmp.lt.s32.totalorder %s10, 5
      %p135 = pnand %p133, %p134
      %p136 = pneg %p135
      // Predicated region
      $region9: #{unet_up_forward.2} parent=5 // pred_check
        _
      $region10: #{unet_up_forward.2} parent=5 // pred_check_branch
        %138 = sbr.rel (%p135) target = $region12
      $region11: #{unet_up_forward.2} parent=5 // pred_region
        %s139 = ssub.s32 %s10, 1
        // Predicated region
        $region13: #{unet_up_forward.2} parent=11 // pred_check
          %p140 = pneg %p71
        $region14: #{unet_up_forward.2} parent=11 // pred_check_branch
          %142 = sbr.rel (%p140) target = $region16
        $region15: #{unet_up_forward.2} parent=11 // pred_region
          _
        $region16: #{unet_up_forward.2} parent=11 // pred_fallthru
          _
      $region12: #{unet_up_forward.2} parent=5 // pred_fallthru
        _
      %p143 = scmp.lt.s32.totalorder %s10, 4
      // Predicated region
      $region17: #{unet_up_forward.2} parent=5 // pred_check
        %p144 = pneg %p143
      $region18: #{unet_up_forward.2} parent=5 // pred_check_branch
        %146 = sbr.rel (%p144) target = $region20
      $region19: #{unet_up_forward.2} parent=5 // pred_region
        // Predicated region
        $region21: #{unet_up_forward.2} parent=19 // pred_check
          %p147 = pneg %p44
        $region22: #{unet_up_forward.2} parent=19 // pred_check_branch
          %149 = sbr.rel (%p147) target = $region24
        $region23: #{unet_up_forward.2} parent=19 // pred_region
          %s150 = sand.u32 %s34, 1
          %s151 = sand.u32 %s34, 1
          %s152 = smul.addr %s151, 36
          %s153 = scalar_lea.vmem [#allocation2], %s152
          %s154 = smul.addr %s17, 18
          %s155 = sadd.s32 %s18, %s154
          %s156 = smul.addr %s155, 4
          %s157 = scalar_lea.vmem %s0, %s156
          // Predicated region
          $region25: #{unet_up_forward.2} parent=23 // pred_check
            _
          $region26: #{unet_up_forward.2} parent=23 // pred_check_branch
            %159 = sbr.rel (0) target = $region28
          $region27: #{unet_up_forward.2} parent=23 // pred_region
            // Predicated region
            $region29: #{unet_up_forward.2} parent=27 // pred_check
              _
            $region30: #{unet_up_forward.2} parent=27 // pred_check_branch
              %161 = sbr.rel target = $region32
            $region31: #{unet_up_forward.2} parent=27 // pred_region
              // Predicated region
              $region44: #{unet_up_forward.2} parent=31 // pred_check
                _
              $region45: #{unet_up_forward.2} parent=31 // pred_check_branch
                %192 = sbr.rel (0) target = $region47
              $region46: #{unet_up_forward.2} parent=31 // pred_region
                loop: start=0, step=1, limit=1
                $region48: #{unet_up_forward.2} parent=46 // loop_pre_header
                  _
                $region49: #{unet_up_forward.2} parent=46 // loop_header
                  %s194 = sphi 0, %s198
                  %p195 = scmp.ge.s32.totalorder %s194, 1
                  %s199 = sphi %s157, %s157
                  %s200 = sphi %s153, %s153
                $region50: #{unet_up_forward.2} parent=46 // loop_header_branch
                  %197 = sbr.rel (%p195) target = $region54
                $region51: #{unet_up_forward.2} parent=46 // loop_body
                  _
                $region52: #{unet_up_forward.2} parent=46 // loop_footer
                  %s198 = sadd.s32 1, %s194
                $region53: #{unet_up_forward.2} parent=46 // loop_footer_branch
                  %193 = sbr.rel target = $region49
                $region54: #{unet_up_forward.2} parent=46 // loop_exit
                  _
                loop: start=0, step=1, limit=1
                $region55: #{unet_up_forward.2} parent=46 // loop_pre_header
                  _
                $region56: #{unet_up_forward.2} parent=46 // loop_header
                  %s203 = sphi 0, %s207
                  %p204 = scmp.ge.s32.totalorder %s203, 1
                  %s208 = sphi %s157, %s157
                  %s209 = sphi %s153, %s153
                $region57: #{unet_up_forward.2} parent=46 // loop_header_branch
                  %206 = sbr.rel (%p204) target = $region61
                $region58: #{unet_up_forward.2} parent=46 // loop_body
                  %v210 = vld [vmem:[%s208] sm:$0xf]
                  %211 = vst [vmem:[%s209] sm:$0xf] %v210
                  %v212 = vld [vmem:[%s208 + $0x8] sm:$0xf]
                  %213 = vst [vmem:[%s209 + $0x4] sm:$0xf] %v212
                  %v214 = vld [vmem:[%s208 + $0x10] sm:$0xf]
                  %215 = vst [vmem:[%s209 + $0x8] sm:$0xf] %v214
                  %v216 = vld [vmem:[%s208 + $0x18] sm:$0xf]
                  %217 = vst [vmem:[%s209 + $0xc] sm:$0xf] %v216
                  %v218 = vld [vmem:[%s208 + $0x20] sm:$0xf]
                  %219 = vst [vmem:[%s209 + $0x10] sm:$0xf] %v218
                  %v220 = vld [vmem:[%s208 + $0x28] sm:$0xf]
                  %221 = vst [vmem:[%s209 + $0x14] sm:$0xf] %v220
                  %v222 = vld [vmem:[%s208 + $0x30] sm:$0xf]
                  %223 = vst [vmem:[%s209 + $0x18] sm:$0xf] %v222
                  %v224 = vld [vmem:[%s208 + $0x38] sm:$0xf]
                  %225 = vst [vmem:[%s209 + $0x1c] sm:$0xf] %v224
                  %v226 = vld [vmem:[%s208 + $0x40] sm:$0xf]
                  %227 = vst [vmem:[%s209 + $0x20] sm:$0xf] %v226
                $region59: #{unet_up_forward.2} parent=46 // loop_footer
                  %s207 = sadd.s32 1, %s203
                $region60: #{unet_up_forward.2} parent=46 // loop_footer_branch
                  %202 = sbr.rel target = $region56
                $region61: #{unet_up_forward.2} parent=46 // loop_exit
                  _
              $region47: #{unet_up_forward.2} parent=31 // pred_fallthru
                _
            $region32: #{unet_up_forward.2} parent=27 // pred_fallthru
              _
            // Predicated region
            $region33: #{unet_up_forward.2} parent=27 // pred_check
              _
            $region34: #{unet_up_forward.2} parent=27 // pred_check_branch
              %163 = sbr.rel (0) target = $region36
            $region35: #{unet_up_forward.2} parent=27 // pred_region
              loop: start=0, step=1, limit=1
              $region37: #{unet_up_forward.2} parent=35 // loop_pre_header
                _
              $region38: #{unet_up_forward.2} parent=35 // loop_header
                %s166 = sphi 0, %s170
                %p167 = scmp.ge.s32.totalorder %s166, 1
                %s171 = sphi %s157, %s157
                %s172 = sphi %s153, %s153
              $region39: #{unet_up_forward.2} parent=35 // loop_header_branch
                %169 = sbr.rel (%p167) target = $region43
              $region40: #{unet_up_forward.2} parent=35 // loop_body
                %v173 = vld [vmem:[%s171] sm:$0xf]
                %174 = vst [vmem:[%s172] sm:$0xf] %v173
                %v175 = vld [vmem:[%s171 + $0x8] sm:$0xf]
                %176 = vst [vmem:[%s172 + $0x4] sm:$0xf] %v175
                %v177 = vld [vmem:[%s171 + $0x10] sm:$0xf]
                %178 = vst [vmem:[%s172 + $0x8] sm:$0xf] %v177
                %v179 = vld [vmem:[%s171 + $0x18] sm:$0xf]
                %180 = vst [vmem:[%s172 + $0xc] sm:$0xf] %v179
                %v181 = vld [vmem:[%s171 + $0x20] sm:$0xf]
                %182 = vst [vmem:[%s172 + $0x10] sm:$0xf] %v181
                %v183 = vld [vmem:[%s171 + $0x28] sm:$0xf]
                %184 = vst [vmem:[%s172 + $0x14] sm:$0xf] %v183
                %v185 = vld [vmem:[%s171 + $0x30] sm:$0xf]
                %186 = vst [vmem:[%s172 + $0x18] sm:$0xf] %v185
                %v187 = vld [vmem:[%s171 + $0x38] sm:$0xf]
                %188 = vst [vmem:[%s172 + $0x1c] sm:$0xf] %v187
                %v189 = vld [vmem:[%s171 + $0x40] sm:$0xf]
                %190 = vst [vmem:[%s172 + $0x20] sm:$0xf] %v189
              $region41: #{unet_up_forward.2} parent=35 // loop_footer
                %s170 = sadd.s32 1, %s166
              $region42: #{unet_up_forward.2} parent=35 // loop_footer_branch
                %165 = sbr.rel target = $region38
              $region43: #{unet_up_forward.2} parent=35 // loop_exit
                _
            $region36: #{unet_up_forward.2} parent=27 // pred_fallthru
              _
          $region28: #{unet_up_forward.2} parent=23 // pred_fallthru
            _
          %228 = vnop
        $region24: #{unet_up_forward.2} parent=19 // pred_fallthru
          _
      $region20: #{unet_up_forward.2} parent=5 // pred_fallthru
        _
      %p229 = scmp.le.s32.totalorder 1, %s10
      %p230 = scmp.lt.s32.totalorder %s10, 5
      %p231 = pnand %p229, %p230
      %p232 = pneg %p231
      // Predicated region
      $region62: #{unet_up_forward.2} parent=5 // pred_check
        _
      $region63: #{unet_up_forward.2} parent=5 // pred_check_branch
        %234 = sbr.rel (%p231) target = $region65
      $region64: #{unet_up_forward.2} parent=5 // pred_region
        %s235 = ssub.s32 %s10, 1
        %s236 = sand.u32 %s37, 1
        %s237 = sand.u32 %s37, 1
        %s238 = smul.addr %s237, 36
        %s239 = scalar_lea.vmem [#allocation2], %s238
        // Predicated region
        $region66: #{unet_up_forward.2} parent=64 // pred_check
          %p240 = pneg %p50
        $region67: #{unet_up_forward.2} parent=64 // pred_check_branch
          %242 = sbr.rel (%p240) target = $region69
        $region68: #{unet_up_forward.2} parent=64 // pred_region
          _
        $region69: #{unet_up_forward.2} parent=64 // pred_fallthru
          _
        %s243 = sand.u32 %s37, 1
        %s244 = sand.u32 %s37, 1
        %s245 = smul.addr %s244, 36
        %s246 = scalar_lea.vmem [#allocation2], %s245
        %p247 = pneg %p50
        %p248 = pneg %p47
        %p249 = pneg %p71
        %p250 = pneg %p68
        %p251 = pneg %p99
        %p252 = pneg %p96
        %s253 = sand.u32 %s86, 1
        %s254 = sand.u32 %s86, 1
        %s255 = smul.addr %s254, 16
        %s256 = scalar_lea.vmem [#allocation3], %s255
        %p257 = pneg %p125
        %p258 = pneg %p122
        %p259 = scmp.lt.s32.totalorder %s19, 1
        %s260 = scalar_select %p259, %s19, 1
        %s261 = smul.addr %s260, 4
        %s262 = scalar_lea.vmem %s3, %s261
        %p263 = scmp.lt.s32.totalorder %s19, 1
        %s264 = scalar_select %p263, %s19, 1
        %s265 = smul.addr %s264, 4
        %s266 = scalar_lea.vmem %s3, %s265
        %p267 = scmp.eq.s32.totalorder %s20, 0
        // Predicated region
        $region70: #{unet_up_forward.2} parent=64 // pred_check
          %p268 = pneg %p267
        $region71: #{unet_up_forward.2} parent=64 // pred_check_branch
          %270 = sbr.rel (%p268) target = $region73
        $region72: #{unet_up_forward.2} parent=64 // pred_region
          %vm271 = vcmask 11264
          %272 = vst.msk [vmem:[%s266] sm:$0xf] %vm271, 0.0
        $region73: #{unet_up_forward.2} parent=64 // pred_fallthru
          _
        %v273 = vld [vmem:[%s1] sm:$0xf]
        %v274 = vld [vmem:[%s239] sm:$0xf]
        %s275 = scalar_lea.vmem %s1, 4
        %v276 = vld [vmem:[%s275] sm:$0xf]
        %s277 = scalar_lea.vmem %s239, 4 [#allocation2]
        %v278 = vld [vmem:[%s277] sm:$0xf]
        %vm279 = vcmask 31744
        %v281 = vsel %vm279, %v276, 0
        %vm283 = vcmask 1043456
        %v285 = vsel %vm283, %v278, 0
        %287 = vmatprep.subr.mxu0 0.0
        %288 = vmatpush1.msra.mxu0 %v285
        %289 = vmatprep.subr.mxu0 0.0
        %290 = vmatpush1.msra.mxu0 0.0
        %291 = vmatprep.subr.mxu0 0.0
        %292 = vmatpush1.msra.mxu0 0.0
        %293 = vmatprep.subr.mxu0 0.0
        %294 = vmatpush1.msra.mxu0 0.0
        %295 = vmatprep.subr.mxu0 0.0
        %296 = vmatpush1.msra.mxu0 0.0
        %297 = vmatprep.subr.mxu0 0.0
        %298 = vmatpush1.msra.mxu0 0.0
        %299 = vmatprep.subr.mxu0 0.0
        %300 = vmatpush1.msra.mxu0 0.0
        %301 = vmatprep.subr.mxu0 0.0
        %302 = vmatpush1.msra.mxu0 0.0
        %303 = vmatprep.subr.mxu0 0.0
        %304 = vmatpush1.msra.mxu0 0.0
        %305 = vmatprep.subr.mxu0 0.0
        %306 = vmatpush1.msra.mxu0 0.0
        %307 = vmatprep.subr.mxu0 0.0
        %308 = vmatpush1.msra.mxu0 0.0
        %309 = vmatprep.subr.mxu0 0.0
        %310 = vmatpush1.msra.mxu0 0.0
        %311 = vmatprep.subr.mxu0 0.0
        %312 = vmatpush1.msra.mxu0 0.0
        %313 = vmatprep.subr.mxu0 0.0
        %314 = vmatpush1.msra.mxu0 0.0
        %315 = vmatprep.subr.mxu0 0.0
        %316 = vmatpush1.msra.mxu0 0.0
        %317 = vmatprep.subr.mxu0 0.0
        %318 = vmatpush1.msra.mxu0 0.0
        %319 = vmatprep.subr.mxu0 0.0
        %320 = vmatpush1.msra.mxu0 0.0
        %321 = vmatprep.subr.mxu0 0.0
        %322 = vmatpush1.msra.mxu0 0.0
        %323 = vmatprep.subr.mxu0 0.0
        %324 = vmatpush1.msra.mxu0 0.0
        %325 = vmatprep.subr.mxu0 0.0
        %326 = vmatpush1.msra.mxu0 0.0
        %327 = vmatprep.subr.mxu0 0.0
        %328 = vmatpush1.msra.mxu0 0.0
        %329 = vmatprep.subr.mxu0 0.0
        %330 = vmatpush1.msra.mxu0 0.0
        %331 = vmatprep.subr.mxu0 0.0
        %332 = vmatpush1.msra.mxu0 0.0
        %333 = vmatprep.subr.mxu0 0.0
        %334 = vmatpush1.msra.mxu0 0.0
        %335 = vmatprep.subr.mxu0 0.0
        %336 = vmatpush1.msra.mxu0 0.0
        %337 = vmatprep.subr.mxu0 0.0
        %338 = vmatpush1.msra.mxu0 0.0
        %339 = vmatprep.subr.mxu0 0.0
        %340 = vmatpush1.msra.mxu0 0.0
        %341 = vmatprep.subr.mxu0 0.0
        %342 = vmatpush1.msra.mxu0 0.0
        %343 = vmatprep.subr.mxu0 0.0
        %344 = vmatpush1.msra.mxu0 0.0
        %345 = vmatprep.subr.mxu0 0.0
        %346 = vmatpush1.msra.mxu0 0.0
        %347 = vmatprep.subr.mxu0 0.0
        %348 = vmatpush1.msra.mxu0 0.0
        %349 = vmatprep.subr.mxu0 0.0
        %350 = vmatpush1.msra.mxu0 0.0
        %351 = vmatprep.mubr.f32.mxu0 0.0
        %352 = vmatmul.mubr.f32.gmra.mrb[0].mxu0 %v281
        %v353 = vpop.f32.mrb[0].mxu0
        %v354 = vadd.f32 0.0, %v353
        %v355 = vpop.f32.mrb[0].mxu0
        %356 = vdwg.mxu0
        %v358 = vsel %vm279, %v273, 0
        %v361 = vsel %vm283, %v274, 0
        %363 = vmatprep.subr.mxu0 0.0
        %364 = vmatpush1.msra.mxu0 %v361
        %365 = vmatprep.subr.mxu0 0.0
        %366 = vmatpush1.msra.mxu0 0.0
        %367 = vmatprep.subr.mxu0 0.0
        %368 = vmatpush1.msra.mxu0 0.0
        %369 = vmatprep.subr.mxu0 0.0
        %370 = vmatpush1.msra.mxu0 0.0
        %371 = vmatprep.subr.mxu0 0.0
        %372 = vmatpush1.msra.mxu0 0.0
        %373 = vmatprep.subr.mxu0 0.0
        %374 = vmatpush1.msra.mxu0 0.0
        %375 = vmatprep.subr.mxu0 0.0
        %376 = vmatpush1.msra.mxu0 0.0
        %377 = vmatprep.subr.mxu0 0.0
        %378 = vmatpush1.msra.mxu0 0.0
        %379 = vmatprep.subr.mxu0 0.0
        %380 = vmatpush1.msra.mxu0 0.0
        %381 = vmatprep.subr.mxu0 0.0
        %382 = vmatpush1.msra.mxu0 0.0
        %383 = vmatprep.subr.mxu0 0.0
        %384 = vmatpush1.msra.mxu0 0.0
        %385 = vmatprep.subr.mxu0 0.0
        %386 = vmatpush1.msra.mxu0 0.0
        %387 = vmatprep.subr.mxu0 0.0
        %388 = vmatpush1.msra.mxu0 0.0
        %389 = vmatprep.subr.mxu0 0.0
        %390 = vmatpush1.msra.mxu0 0.0
        %391 = vmatprep.subr.mxu0 0.0
        %392 = vmatpush1.msra.mxu0 0.0
        %393 = vmatprep.subr.mxu0 0.0
        %394 = vmatpush1.msra.mxu0 0.0
        %395 = vmatprep.subr.mxu0 0.0
        %396 = vmatpush1.msra.mxu0 0.0
        %397 = vmatprep.subr.mxu0 0.0
        %398 = vmatpush1.msra.mxu0 0.0
        %399 = vmatprep.subr.mxu0 0.0
        %400 = vmatpush1.msra.mxu0 0.0
        %401 = vmatprep.subr.mxu0 0.0
        %402 = vmatpush1.msra.mxu0 0.0
        %403 = vmatprep.subr.mxu0 0.0
        %404 = vmatpush1.msra.mxu0 0.0
        %405 = vmatprep.subr.mxu0 0.0
        %406 = vmatpush1.msra.mxu0 0.0
        %407 = vmatprep.subr.mxu0 0.0
        %408 = vmatpush1.msra.mxu0 0.0
        %409 = vmatprep.subr.mxu0 0.0
        %410 = vmatpush1.msra.mxu0 0.0
        %411 = vmatprep.subr.mxu0 0.0
        %412 = vmatpush1.msra.mxu0 0.0
        %413 = vmatprep.subr.mxu0 0.0
        %414 = vmatpush1.msra.mxu0 0.0
        %415 = vmatprep.subr.mxu0 0.0
        %416 = vmatpush1.msra.mxu0 0.0
        %417 = vmatprep.subr.mxu0 0.0
        %418 = vmatpush1.msra.mxu0 0.0
        %419 = vmatprep.subr.mxu0 0.0
        %420 = vmatpush1.msra.mxu0 0.0
        %421 = vmatprep.subr.mxu0 0.0
        %422 = vmatpush1.msra.mxu0 0.0
        %423 = vmatprep.subr.mxu0 0.0
        %424 = vmatpush1.msra.mxu0 0.0
        %425 = vmatprep.subr.mxu0 0.0
        %426 = vmatpush1.msra.mxu0 0.0
        %427 = vmatprep.mubr.f32.mxu0 0.0
        %428 = vmatmul.mubr.f32.gmra.mrb[0].mxu0 %v358
        %v429 = vpop.f32.mrb[0].mxu0
        %v430 = vadd.f32 %v354, %v429
        %v431 = vpop.f32.mrb[0].mxu0
        %432 = vdwg.mxu0
        %s433 = scalar_lea.vmem %s1, 8
        %v434 = vld [vmem:[%s433] sm:$0xf]
        %s435 = scalar_lea.vmem %s239, 12 [#allocation2]
        %v436 = vld [vmem:[%s435] sm:$0xf]
        %v438 = vsel %vm279, %v434, 0
        %v441 = vsel %vm283, %v436, 0
        %443 = vmatprep.subr.mxu0 0.0
        %444 = vmatpush1.msra.mxu0 %v441
        %445 = vmatprep.subr.mxu0 0.0
        %446 = vmatpush1.msra.mxu0 0.0
        %447 = vmatprep.subr.mxu0 0.0
        %448 = vmatpush1.msra.mxu0 0.0
        %449 = vmatprep.subr.mxu0 0.0
        %450 = vmatpush1.msra.mxu0 0.0
        %451 = vmatprep.subr.mxu0 0.0
        %452 = vmatpush1.msra.mxu0 0.0
        %453 = vmatprep.subr.mxu0 0.0
        %454 = vmatpush1.msra.mxu0 0.0
        %455 = vmatprep.subr.mxu0 0.0
        %456 = vmatpush1.msra.mxu0 0.0
        %457 = vmatprep.subr.mxu0 0.0
        %458 = vmatpush1.msra.mxu0 0.0
        %459 = vmatprep.subr.mxu0 0.0
        %460 = vmatpush1.msra.mxu0 0.0
        %461 = vmatprep.subr.mxu0 0.0
        %462 = vmatpush1.msra.mxu0 0.0
        %463 = vmatprep.subr.mxu0 0.0
        %464 = vmatpush1.msra.mxu0 0.0
        %465 = vmatprep.subr.mxu0 0.0
        %466 = vmatpush1.msra.mxu0 0.0
        %467 = vmatprep.subr.mxu0 0.0
        %468 = vmatpush1.msra.mxu0 0.0
        %469 = vmatprep.subr.mxu0 0.0
        %470 = vmatpush1.msra.mxu0 0.0
        %471 = vmatprep.subr.mxu0 0.0
        %472 = vmatpush1.msra.mxu0 0.0
        %473 = vmatprep.subr.mxu0 0.0
        %474 = vmatpush1.msra.mxu0 0.0
        %475 = vmatprep.subr.mxu0 0.0
        %476 = vmatpush1.msra.mxu0 0.0
        %477 = vmatprep.subr.mxu0 0.0
        %478 = vmatpush1.msra.mxu0 0.0
        %479 = vmatprep.subr.mxu0 0.0
        %480 = vmatpush1.msra.mxu0 0.0
        %481 = vmatprep.subr.mxu0 0.0
        %482 = vmatpush1.msra.mxu0 0.0
        %483 = vmatprep.subr.mxu0 0.0
        %484 = vmatpush1.msra.mxu0 0.0
        %485 = vmatprep.subr.mxu0 0.0
        %486 = vmatpush1.msra.mxu0 0.0
        %487 = vmatprep.subr.mxu0 0.0
        %488 = vmatpush1.msra.mxu0 0.0
        %489 = vmatprep.subr.mxu0 0.0
        %490 = vmatpush1.msra.mxu0 0.0
        %491 = vmatprep.subr.mxu0 0.0
        %492 = vmatpush1.msra.mxu0 0.0
        %493 = vmatprep.subr.mxu0 0.0
        %494 = vmatpush1.msra.mxu0 0.0
        %495 = vmatprep.subr.mxu0 0.0
        %496 = vmatpush1.msra.mxu0 0.0
        %497 = vmatprep.subr.mxu0 0.0
        %498 = vmatpush1.msra.mxu0 0.0
        %499 = vmatprep.subr.mxu0 0.0
        %500 = vmatpush1.msra.mxu0 0.0
        %501 = vmatprep.subr.mxu0 0.0
        %502 = vmatpush1.msra.mxu0 0.0
        %503 = vmatprep.subr.mxu0 0.0
        %504 = vmatpush1.msra.mxu0 0.0
        %505 = vmatprep.subr.mxu0 0.0
        %506 = vmatpush1.msra.mxu0 0.0
        %507 = vmatprep.mubr.f32.mxu0 0.0
        %508 = vmatmul.mubr.f32.gmra.mrb[0].mxu0 %v438
        %v509 = vpop.f32.mrb[0].mxu0
        %v510 = vadd.f32 0.0, %v509
        %v511 = vpop.f32.mrb[0].mxu0
        %512 = vdwg.mxu0
        %v513 = vadd.f32 %v430, %v510
        %s514 = scalar_lea.vmem %s1, 12
        %v515 = vld [vmem:[%s514] sm:$0xf]
        %s516 = scalar_lea.vmem %s239, 16 [#allocation2]
        %v517 = vld [vmem:[%s516] sm:$0xf]
        %v519 = vsel %vm279, %v515, 0
        %v522 = vsel %vm283, %v517, 0
        %524 = vmatprep.subr.mxu0 0.0
        %525 = vmatpush1.msra.mxu0 %v522
        %526 = vmatprep.subr.mxu0 0.0
        %527 = vmatpush1.msra.mxu0 0.0
        %528 = vmatprep.subr.mxu0 0.0
        %529 = vmatpush1.msra.mxu0 0.0
        %530 = vmatprep.subr.mxu0 0.0
        %531 = vmatpush1.msra.mxu0 0.0
        %532 = vmatprep.subr.mxu0 0.0
        %533 = vmatpush1.msra.mxu0 0.0
        %534 = vmatprep.subr.mxu0 0.0
        %535 = vmatpush1.msra.mxu0 0.0
        %536 = vmatprep.subr.mxu0 0.0
        %537 = vmatpush1.msra.mxu0 0.0
        %538 = vmatprep.subr.mxu0 0.0
        %539 = vmatpush1.msra.mxu0 0.0
        %540 = vmatprep.subr.mxu0 0.0
        %541 = vmatpush1.msra.mxu0 0.0
        %542 = vmatprep.subr.mxu0 0.0
        %543 = vmatpush1.msra.mxu0 0.0
        %544 = vmatprep.subr.mxu0 0.0
        %545 = vmatpush1.msra.mxu0 0.0
        %546 = vmatprep.subr.mxu0 0.0
        %547 = vmatpush1.msra.mxu0 0.0
        %548 = vmatprep.subr.mxu0 0.0
        %549 = vmatpush1.msra.mxu0 0.0
        %550 = vmatprep.subr.mxu0 0.0
        %551 = vmatpush1.msra.mxu0 0.0
        %552 = vmatprep.subr.mxu0 0.0
        %553 = vmatpush1.msra.mxu0 0.0
        %554 = vmatprep.subr.mxu0 0.0
        %555 = vmatpush1.msra.mxu0 0.0
        %556 = vmatprep.subr.mxu0 0.0
        %557 = vmatpush1.msra.mxu0 0.0
        %558 = vmatprep.subr.mxu0 0.0
        %559 = vmatpush1.msra.mxu0 0.0
        %560 = vmatprep.subr.mxu0 0.0
        %561 = vmatpush1.msra.mxu0 0.0
        %562 = vmatprep.subr.mxu0 0.0
        %563 = vmatpush1.msra.mxu0 0.0
        %564 = vmatprep.subr.mxu0 0.0
        %565 = vmatpush1.msra.mxu0 0.0
        %566 = vmatprep.subr.mxu0 0.0
        %567 = vmatpush1.msra.mxu0 0.0
        %568 = vmatprep.subr.mxu0 0.0
        %569 = vmatpush1.msra.mxu0 0.0
        %570 = vmatprep.subr.mxu0 0.0
        %571 = vmatpush1.msra.mxu0 0.0
        %572 = vmatprep.subr.mxu0 0.0
        %573 = vmatpush1.msra.mxu0 0.0
        %574 = vmatprep.subr.mxu0 0.0
        %575 = vmatpush1.msra.mxu0 0.0
        %576 = vmatprep.subr.mxu0 0.0
        %577 = vmatpush1.msra.mxu0 0.0
        %578 = vmatprep.subr.mxu0 0.0
        %579 = vmatpush1.msra.mxu0 0.0
        %580 = vmatprep.subr.mxu0 0.0
        %581 = vmatpush1.msra.mxu0 0.0
        %582 = vmatprep.subr.mxu0 0.0
        %583 = vmatpush1.msra.mxu0 0.0
        %584 = vmatprep.subr.mxu0 0.0
        %585 = vmatpush1.msra.mxu0 0.0
        %586 = vmatprep.subr.mxu0 0.0
        %587 = vmatpush1.msra.mxu0 0.0
        %588 = vmatprep.mubr.f32.mxu0 0.0
        %589 = vmatmul.mubr.f32.gmra.mrb[0].mxu0 %v519
        %v590 = vpop.f32.mrb[0].mxu0
        %v591 = vadd.f32 0.0, %v590
        %v592 = vpop.f32.mrb[0].mxu0
        %593 = vdwg.mxu0
        %v594 = vadd.f32 %v513, %v591
        %595 = vst [vmem:[%s256] sm:$0xf] %v594
        %v596 = vsel %vm283, %v594, 0.0
        %597 = vadd.xlane.f32.xlu0 %v596
        %v598 = vpop.xlane.xlu0 %597
        %v599 = vadd.f32 %v598, 0.0
        %v600 = vmul.f32 %v594, %v594
        %v601 = vsel %vm283, %v600, 0.0
        %602 = vadd.xlane.f32.xlu0 %v601
        %v603 = vpop.xlane.xlu0 %602
        %v604 = vadd.f32 %v603, 0.0
        %s605 = scalar_lea.vmem %s1, 16
        %v606 = vld [vmem:[%s605] sm:$0xf]
        %v607 = vld [vmem:[%s277] sm:$0xf]
        %s608 = scalar_lea.vmem %s1, 20
        %v609 = vld [vmem:[%s608] sm:$0xf]
        %s610 = scalar_lea.vmem %s239, 8 [#allocation2]
        %v611 = vld [vmem:[%s610] sm:$0xf]
        %v613 = vsel %vm279, %v609, 0
        %v616 = vsel %vm283, %v611, 0
        %618 = vmatprep.subr.mxu0 0.0
        %619 = vmatpush1.msra.mxu0 %v616
        %620 = vmatprep.subr.mxu0 0.0
        %621 = vmatpush1.msra.mxu0 0.0
        %622 = vmatprep.subr.mxu0 0.0
        %623 = vmatpush1.msra.mxu0 0.0
        %624 = vmatprep.subr.mxu0 0.0
        %625 = vmatpush1.msra.mxu0 0.0
        %626 = vmatprep.subr.mxu0 0.0
        %627 = vmatpush1.msra.mxu0 0.0
        %628 = vmatprep.subr.mxu0 0.0
        %629 = vmatpush1.msra.mxu0 0.0
        %630 = vmatprep.subr.mxu0 0.0
        %631 = vmatpush1.msra.mxu0 0.0
        %632 = vmatprep.subr.mxu0 0.0
        %633 = vmatpush1.msra.mxu0 0.0
        %634 = vmatprep.subr.mxu0 0.0
        %635 = vmatpush1.msra.mxu0 0.0
        %636 = vmatprep.subr.mxu0 0.0
        %637 = vmatpush1.msra.mxu0 0.0
        %638 = vmatprep.subr.mxu0 0.0
        %639 = vmatpush1.msra.mxu0 0.0
        %640 = vmatprep.subr.mxu0 0.0
        %641 = vmatpush1.msra.mxu0 0.0
        %642 = vmatprep.subr.mxu0 0.0
        %643 = vmatpush1.msra.mxu0 0.0
        %644 = vmatprep.subr.mxu0 0.0
        %645 = vmatpush1.msra.mxu0 0.0
        %646 = vmatprep.subr.mxu0 0.0
        %647 = vmatpush1.msra.mxu0 0.0
        %648 = vmatprep.subr.mxu0 0.0
        %649 = vmatpush1.msra.mxu0 0.0
        %650 = vmatprep.subr.mxu0 0.0
        %651 = vmatpush1.msra.mxu0 0.0
        %652 = vmatprep.subr.mxu0 0.0
        %653 = vmatpush1.msra.mxu0 0.0
        %654 = vmatprep.subr.mxu0 0.0
        %655 = vmatpush1.msra.mxu0 0.0
        %656 = vmatprep.subr.mxu0 0.0
        %657 = vmatpush1.msra.mxu0 0.0
        %658 = vmatprep.subr.mxu0 0.0
        %659 = vmatpush1.msra.mxu0 0.0
        %660 = vmatprep.subr.mxu0 0.0
        %661 = vmatpush1.msra.mxu0 0.0
        %662 = vmatprep.subr.mxu0 0.0
        %663 = vmatpush1.msra.mxu0 0.0
        %664 = vmatprep.subr.mxu0 0.0
        %665 = vmatpush1.msra.mxu0 0.0
        %666 = vmatprep.subr.mxu0 0.0
        %667 = vmatpush1.msra.mxu0 0.0
        %668 = vmatprep.subr.mxu0 0.0
        %669 = vmatpush1.msra.mxu0 0.0
        %670 = vmatprep.subr.mxu0 0.0
        %671 = vmatpush1.msra.mxu0 0.0
        %672 = vmatprep.subr.mxu0 0.0
        %673 = vmatpush1.msra.mxu0 0.0
        %674 = vmatprep.subr.mxu0 0.0
        %675 = vmatpush1.msra.mxu0 0.0
        %676 = vmatprep.subr.mxu0 0.0
        %677 = vmatpush1.msra.mxu0 0.0
        %678 = vmatprep.subr.mxu0 0.0
        %679 = vmatpush1.msra.mxu0 0.0
        %680 = vmatprep.subr.mxu0 0.0
        %681 = vmatpush1.msra.mxu0 0.0
        %682 = vmatprep.mubr.f32.mxu0 0.0
        %683 = vmatmul.mubr.f32.gmra.mrb[0].mxu0 %v613
        %v684 = vpop.f32.mrb[0].mxu0
        %v685 = vadd.f32 0.0, %v684
        %v686 = vpop.f32.mrb[0].mxu0
        %687 = vdwg.mxu0
        %v689 = vsel %vm279, %v606, 0
        %v692 = vsel %vm283, %v607, 0
        %694 = vmatprep.subr.mxu0 0.0
        %695 = vmatpush1.msra.mxu0 %v692
        %696 = vmatprep.subr.mxu0 0.0
        %697 = vmatpush1.msra.mxu0 0.0
        %698 = vmatprep.subr.mxu0 0.0
        %699 = vmatpush1.msra.mxu0 0.0
        %700 = vmatprep.subr.mxu0 0.0
        %701 = vmatpush1.msra.mxu0 0.0
        %702 = vmatprep.subr.mxu0 0.0
        %703 = vmatpush1.msra.mxu0 0.0
        %704 = vmatprep.subr.mxu0 0.0
        %705 = vmatpush1.msra.mxu0 0.0
        %706 = vmatprep.subr.mxu0 0.0
        %707 = vmatpush1.msra.mxu0 0.0
        %708 = vmatprep.subr.mxu0 0.0
        %709 = vmatpush1.msra.mxu0 0.0
        %710 = vmatprep.subr.mxu0 0.0
        %711 = vmatpush1.msra.mxu0 0.0
        %712 = vmatprep.subr.mxu0 0.0
        %713 = vmatpush1.msra.mxu0 0.0
        %714 = vmatprep.subr.mxu0 0.0
        %715 = vmatpush1.msra.mxu0 0.0
        %716 = vmatprep.subr.mxu0 0.0
        %717 = vmatpush1.msra.mxu0 0.0
        %718 = vmatprep.subr.mxu0 0.0
        %719 = vmatpush1.msra.mxu0 0.0
        %720 = vmatprep.subr.mxu0 0.0
        %721 = vmatpush1.msra.mxu0 0.0
        %722 = vmatprep.subr.mxu0 0.0
        %723 = vmatpush1.msra.mxu0 0.0
        %724 = vmatprep.subr.mxu0 0.0
        %725 = vmatpush1.msra.mxu0 0.0
        %726 = vmatprep.subr.mxu0 0.0
        %727 = vmatpush1.msra.mxu0 0.0
        %728 = vmatprep.subr.mxu0 0.0
        %729 = vmatpush1.msra.mxu0 0.0
        %730 = vmatprep.subr.mxu0 0.0
        %731 = vmatpush1.msra.mxu0 0.0
        %732 = vmatprep.subr.mxu0 0.0
        %733 = vmatpush1.msra.mxu0 0.0
        %734 = vmatprep.subr.mxu0 0.0
        %735 = vmatpush1.msra.mxu0 0.0
        %736 = vmatprep.subr.mxu0 0.0
        %737 = vmatpush1.msra.mxu0 0.0
        %738 = vmatprep.subr.mxu0 0.0
        %739 = vmatpush1.msra.mxu0 0.0
        %740 = vmatprep.subr.mxu0 0.0
        %741 = vmatpush1.msra.mxu0 0.0
        %742 = vmatprep.subr.mxu0 0.0
        %743 = vmatpush1.msra.mxu0 0.0
        %744 = vmatprep.subr.mxu0 0.0
        %745 = vmatpush1.msra.mxu0 0.0
        %746 = vmatprep.subr.mxu0 0.0
        %747 = vmatpush1.msra.mxu0 0.0
        %748 = vmatprep.subr.mxu0 0.0
        %749 = vmatpush1.msra.mxu0 0.0
        %750 = vmatprep.subr.mxu0 0.0
        %751 = vmatpush1.msra.mxu0 0.0
        %752 = vmatprep.subr.mxu0 0.0
        %753 = vmatpush1.msra.mxu0 0.0
        %754 = vmatprep.subr.mxu0 0.0
        %755 = vmatpush1.msra.mxu0 0.0
        %756 = vmatprep.subr.mxu0 0.0
        %757 = vmatpush1.msra.mxu0 0.0
        %758 = vmatprep.mubr.f32.mxu0 0.0
        %759 = vmatmul.mubr.f32.gmra.mrb[0].mxu0 %v689
        %v760 = vpop.f32.mrb[0].mxu0
        %v761 = vadd.f32 %v685, %v760
        %v762 = vpop.f32.mrb[0].mxu0
        %763 = vdwg.mxu0
        %s764 = scalar_lea.vmem %s1, 24
        %v765 = vld [vmem:[%s764] sm:$0xf]
        %v766 = vld [vmem:[%s516] sm:$0xf]
        %v768 = vsel %vm279, %v765, 0
        %v771 = vsel %vm283, %v766, 0
        %773 = vmatprep.subr.mxu0 0.0
        %774 = vmatpush1.msra.mxu0 %v771
        %775 = vmatprep.subr.mxu0 0.0
        %776 = vmatpush1.msra.mxu0 0.0
        %777 = vmatprep.subr.mxu0 0.0
        %778 = vmatpush1.msra.mxu0 0.0
        %779 = vmatprep.subr.mxu0 0.0
        %780 = vmatpush1.msra.mxu0 0.0
        %781 = vmatprep.subr.mxu0 0.0
        %782 = vmatpush1.msra.mxu0 0.0
        %783 = vmatprep.subr.mxu0 0.0
        %784 = vmatpush1.msra.mxu0 0.0
        %785 = vmatprep.subr.mxu0 0.0
        %786 = vmatpush1.msra.mxu0 0.0
        %787 = vmatprep.subr.mxu0 0.0
        %788 = vmatpush1.msra.mxu0 0.0
        %789 = vmatprep.subr.mxu0 0.0
        %790 = vmatpush1.msra.mxu0 0.0
        %791 = vmatprep.subr.mxu0 0.0
        %792 = vmatpush1.msra.mxu0 0.0
        %793 = vmatprep.subr.mxu0 0.0
        %794 = vmatpush1.msra.mxu0 0.0
        %795 = vmatprep.subr.mxu0 0.0
        %796 = vmatpush1.msra.mxu0 0.0
        %797 = vmatprep.subr.mxu0 0.0
        %798 = vmatpush1.msra.mxu0 0.0
        %799 = vmatprep.subr.mxu0 0.0
        %800 = vmatpush1.msra.mxu0 0.0
        %801 = vmatprep.subr.mxu0 0.0
        %802 = vmatpush1.msra.mxu0 0.0
        %803 = vmatprep.subr.mxu0 0.0
        %804 = vmatpush1.msra.mxu0 0.0
        %805 = vmatprep.subr.mxu0 0.0
        %806 = vmatpush1.msra.mxu0 0.0
        %807 = vmatprep.subr.mxu0 0.0
        %808 = vmatpush1.msra.mxu0 0.0
        %809 = vmatprep.subr.mxu0 0.0
        %810 = vmatpush1.msra.mxu0 0.0
        %811 = vmatprep.subr.mxu0 0.0
        %812 = vmatpush1.msra.mxu0 0.0
        %813 = vmatprep.subr.mxu0 0.0
        %814 = vmatpush1.msra.mxu0 0.0
        %815 = vmatprep.subr.mxu0 0.0
        %816 = vmatpush1.msra.mxu0 0.0
        %817 = vmatprep.subr.mxu0 0.0
        %818 = vmatpush1.msra.mxu0 0.0
        %819 = vmatprep.subr.mxu0 0.0
        %820 = vmatpush1.msra.mxu0 0.0
        %821 = vmatprep.subr.mxu0 0.0
        %822 = vmatpush1.msra.mxu0 0.0
        %823 = vmatprep.subr.mxu0 0.0
        %824 = vmatpush1.msra.mxu0 0.0
        %825 = vmatprep.subr.mxu0 0.0
        %826 = vmatpush1.msra.mxu0 0.0
        %827 = vmatprep.subr.mxu0 0.0
        %828 = vmatpush1.msra.mxu0 0.0
        %829 = vmatprep.subr.mxu0 0.0
        %830 = vmatpush1.msra.mxu0 0.0
        %831 = vmatprep.subr.mxu0 0.0
        %832 = vmatpush1.msra.mxu0 0.0
        %833 = vmatprep.subr.mxu0 0.0
        %834 = vmatpush1.msra.mxu0 0.0
        %835 = vmatprep.subr.mxu0 0.0
        %836 = vmatpush1.msra.mxu0 0.0
        %837 = vmatprep.mubr.f32.mxu0 0.0
        %838 = vmatmul.mubr.f32.gmra.mrb[0].mxu0 %v768
        %v839 = vpop.f32.mrb[0].mxu0
        %v840 = vadd.f32 0.0, %v839
        %v841 = vpop.f32.mrb[0].mxu0
        %842 = vdwg.mxu0
        %v843 = vadd.f32 %v761, %v840
        %s844 = scalar_lea.vmem %s1, 28
        %v845 = vld [vmem:[%s844] sm:$0xf]
        %s846 = scalar_lea.vmem %s239, 20 [#allocation2]
        %v847 = vld [vmem:[%s846] sm:$0xf]
        %v849 = vsel %vm279, %v845, 0
        %v852 = vsel %vm283, %v847, 0
        %854 = vmatprep.subr.mxu0 0.0
        %855 = vmatpush1.msra.mxu0 %v852
        %856 = vmatprep.subr.mxu0 0.0
        %857 = vmatpush1.msra.mxu0 0.0
        %858 = vmatprep.subr.mxu0 0.0
        %859 = vmatpush1.msra.mxu0 0.0
        %860 = vmatprep.subr.mxu0 0.0
        %861 = vmatpush1.msra.mxu0 0.0
        %862 = vmatprep.subr.mxu0 0.0
        %863 = vmatpush1.msra.mxu0 0.0
        %864 = vmatprep.subr.mxu0 0.0
        %865 = vmatpush1.msra.mxu0 0.0
        %866 = vmatprep.subr.mxu0 0.0
        %867 = vmatpush1.msra.mxu0 0.0
        %868 = vmatprep.subr.mxu0 0.0
        %869 = vmatpush1.msra.mxu0 0.0
        %870 = vmatprep.subr.mxu0 0.0
        %871 = vmatpush1.msra.mxu0 0.0
        %872 = vmatprep.subr.mxu0 0.0
        %873 = vmatpush1.msra.mxu0 0.0
        %874 = vmatprep.subr.mxu0 0.0
        %875 = vmatpush1.msra.mxu0 0.0
        %876 = vmatprep.subr.mxu0 0.0
        %877 = vmatpush1.msra.mxu0 0.0
        %878 = vmatprep.subr.mxu0 0.0
        %879 = vmatpush1.msra.mxu0 0.0
        %880 = vmatprep.subr.mxu0 0.0
        %881 = vmatpush1.msra.mxu0 0.0
        %882 = vmatprep.subr.mxu0 0.0
        %883 = vmatpush1.msra.mxu0 0.0
        %884 = vmatprep.subr.mxu0 0.0
        %885 = vmatpush1.msra.mxu0 0.0
        %886 = vmatprep.subr.mxu0 0.0
        %887 = vmatpush1.msra.mxu0 0.0
        %888 = vmatprep.subr.mxu0 0.0
        %889 = vmatpush1.msra.mxu0 0.0
        %890 = vmatprep.subr.mxu0 0.0
        %891 = vmatpush1.msra.mxu0 0.0
        %892 = vmatprep.subr.mxu0 0.0
        %893 = vmatpush1.msra.mxu0 0.0
        %894 = vmatprep.subr.mxu0 0.0
        %895 = vmatpush1.msra.mxu0 0.0
        %896 = vmatprep.subr.mxu0 0.0
        %897 = vmatpush1.msra.mxu0 0.0
        %898 = vmatprep.subr.mxu0 0.0
        %899 = vmatpush1.msra.mxu0 0.0
        %900 = vmatprep.subr.mxu0 0.0
        %901 = vmatpush1.msra.mxu0 0.0
        %902 = vmatprep.subr.mxu0 0.0
        %903 = vmatpush1.msra.mxu0 0.0
        %904 = vmatprep.subr.mxu0 0.0
        %905 = vmatpush1.msra.mxu0 0.0
        %906 = vmatprep.subr.mxu0 0.0
        %907 = vmatpush1.msra.mxu0 0.0
        %908 = vmatprep.subr.mxu0 0.0
        %909 = vmatpush1.msra.mxu0 0.0
        %910 = vmatprep.subr.mxu0 0.0
        %911 = vmatpush1.msra.mxu0 0.0
        %912 = vmatprep.subr.mxu0 0.0
        %913 = vmatpush1.msra.mxu0 0.0
        %914 = vmatprep.subr.mxu0 0.0
        %915 = vmatpush1.msra.mxu0 0.0
        %916 = vmatprep.subr.mxu0 0.0
        %917 = vmatpush1.msra.mxu0 0.0
        %918 = vmatprep.mubr.f32.mxu0 0.0
        %919 = vmatmul.mubr.f32.gmra.mrb[0].mxu0 %v849
        %v920 = vpop.f32.mrb[0].mxu0
        %v921 = vadd.f32 0.0, %v920
        %v922 = vpop.f32.mrb[0].mxu0
        %923 = vdwg.mxu0
        %v924 = vadd.f32 %v843, %v921
        %s925 = scalar_lea.vmem %s256, 4 [#allocation3]
        %926 = vst [vmem:[%s925] sm:$0xf] %v924
        %v927 = vsel %vm283, %v924, 0.0
        %928 = vadd.xlane.f32.xlu0 %v927
        %v929 = vpop.xlane.xlu0 %928
        %v930 = vadd.f32 %v599, %v929
        %v931 = vmul.f32 %v924, %v924
        %v932 = vsel %vm283, %v931, 0.0
        %933 = vadd.xlane.f32.xlu0 %v932
        %v934 = vpop.xlane.xlu0 %933
        %v935 = vadd.f32 %v604, %v934
        %s936 = scalar_lea.vmem %s1, 32
        %v937 = vld [vmem:[%s936] sm:$0xf]
        %v938 = vld [vmem:[%s435] sm:$0xf]
        %s939 = scalar_lea.vmem %s1, 36
        %v940 = vld [vmem:[%s939] sm:$0xf]
        %v941 = vld [vmem:[%s516] sm:$0xf]
        %v943 = vsel %vm279, %v940, 0
        %v946 = vsel %vm283, %v941, 0
        %948 = vmatprep.subr.mxu0 0.0
        %949 = vmatpush1.msra.mxu0 %v946
        %950 = vmatprep.subr.mxu0 0.0
        %951 = vmatpush1.msra.mxu0 0.0
        %952 = vmatprep.subr.mxu0 0.0
        %953 = vmatpush1.msra.mxu0 0.0
        %954 = vmatprep.subr.mxu0 0.0
        %955 = vmatpush1.msra.mxu0 0.0
        %956 = vmatprep.subr.mxu0 0.0
        %957 = vmatpush1.msra.mxu0 0.0
        %958 = vmatprep.subr.mxu0 0.0
        %959 = vmatpush1.msra.mxu0 0.0
        %960 = vmatprep.subr.mxu0 0.0
        %961 = vmatpush1.msra.mxu0 0.0
        %962 = vmatprep.subr.mxu0 0.0
        %963 = vmatpush1.msra.mxu0 0.0
        %964 = vmatprep.subr.mxu0 0.0
        %965 = vmatpush1.msra.mxu0 0.0
        %966 = vmatprep.subr.mxu0 0.0
        %967 = vmatpush1.msra.mxu0 0.0
        %968 = vmatprep.subr.mxu0 0.0
        %969 = vmatpush1.msra.mxu0 0.0
        %970 = vmatprep.subr.mxu0 0.0
        %971 = vmatpush1.msra.mxu0 0.0
        %972 = vmatprep.subr.mxu0 0.0
        %973 = vmatpush1.msra.mxu0 0.0
        %974 = vmatprep.subr.mxu0 0.0
        %975 = vmatpush1.msra.mxu0 0.0
        %976 = vmatprep.subr.mxu0 0.0
        %977 = vmatpush1.msra.mxu0 0.0
        %978 = vmatprep.subr.mxu0 0.0
        %979 = vmatpush1.msra.mxu0 0.0
        %980 = vmatprep.subr.mxu0 0.0
        %981 = vmatpush1.msra.mxu0 0.0
        %982 = vmatprep.subr.mxu0 0.0
        %983 = vmatpush1.msra.mxu0 0.0
        %984 = vmatprep.subr.mxu0 0.0
        %985 = vmatpush1.msra.mxu0 0.0
        %986 = vmatprep.subr.mxu0 0.0
        %987 = vmatpush1.msra.mxu0 0.0
        %988 = vmatprep.subr.mxu0 0.0
        %989 = vmatpush1.msra.mxu0 0.0
        %990 = vmatprep.subr.mxu0 0.0
        %991 = vmatpush1.msra.mxu0 0.0
        %992 = vmatprep.subr.mxu0 0.0
        %993 = vmatpush1.msra.mxu0 0.0
        %994 = vmatprep.subr.mxu0 0.0
        %995 = vmatpush1.msra.mxu0 0.0
        %996 = vmatprep.subr.mxu0 0.0
        %997 = vmatpush1.msra.mxu0 0.0
        %998 = vmatprep.subr.mxu0 0.0
        %999 = vmatpush1.msra.mxu0 0.0
        %1000 = vmatprep.subr.mxu0 0.0
        %1001 = vmatpush1.msra.mxu0 0.0
        %1002 = vmatprep.subr.mxu0 0.0
        %1003 = vmatpush1.msra.mxu0 0.0
        %1004 = vmatprep.subr.mxu0 0.0
        %1005 = vmatpush1.msra.mxu0 0.0
        %1006 = vmatprep.subr.mxu0 0.0
        %1007 = vmatpush1.msra.mxu0 0.0
        %1008 = vmatprep.subr.mxu0 0.0
        %1009 = vmatpush1.msra.mxu0 0.0
        %1010 = vmatprep.subr.mxu0 0.0
        %1011 = vmatpush1.msra.mxu0 0.0
        %1012 = vmatprep.mubr.f32.mxu0 0.0
        %1013 = vmatmul.mubr.f32.gmra.mrb[0].mxu0 %v943
        %v1014 = vpop.f32.mrb[0].mxu0
        %v1015 = vadd.f32 0.0, %v1014
        %v1016 = vpop.f32.mrb[0].mxu0
        %1017 = vdwg.mxu0
        %v1019 = vsel %vm279, %v937, 0
        %v1022 = vsel %vm283, %v938, 0
        %1024 = vmatprep.subr.mxu0 0.0
        %1025 = vmatpush1.msra.mxu0 %v1022
        %1026 = vmatprep.subr.mxu0 0.0
        %1027 = vmatpush1.msra.mxu0 0.0
        %1028 = vmatprep.subr.mxu0 0.0
        %1029 = vmatpush1.msra.mxu0 0.0
        %1030 = vmatprep.subr.mxu0 0.0
        %1031 = vmatpush1.msra.mxu0 0.0
        %1032 = vmatprep.subr.mxu0 0.0
        %1033 = vmatpush1.msra.mxu0 0.0
        %1034 = vmatprep.subr.mxu0 0.0
        %1035 = vmatpush1.msra.mxu0 0.0
        %1036 = vmatprep.subr.mxu0 0.0
        %1037 = vmatpush1.msra.mxu0 0.0
        %1038 = vmatprep.subr.mxu0 0.0
        %1039 = vmatpush1.msra.mxu0 0.0
        %1040 = vmatprep.subr.mxu0 0.0
        %1041 = vmatpush1.msra.mxu0 0.0
        %1042 = vmatprep.subr.mxu0 0.0
        %1043 = vmatpush1.msra.mxu0 0.0
        %1044 = vmatprep.subr.mxu0 0.0
        %1045 = vmatpush1.msra.mxu0 0.0
        %1046 = vmatprep.subr.mxu0 0.0
        %1047 = vmatpush1.msra.mxu0 0.0
        %1048 = vmatprep.subr.mxu0 0.0
        %1049 = vmatpush1.msra.mxu0 0.0
        %1050 = vmatprep.subr.mxu0 0.0
        %1051 = vmatpush1.msra.mxu0 0.0
        %1052 = vmatprep.subr.mxu0 0.0
        %1053 = vmatpush1.msra.mxu0 0.0
        %1054 = vmatprep.subr.mxu0 0.0
        %1055 = vmatpush1.msra.mxu0 0.0
        %1056 = vmatprep.subr.mxu0 0.0
        %1057 = vmatpush1.msra.mxu0 0.0
        %1058 = vmatprep.subr.mxu0 0.0
        %1059 = vmatpush1.msra.mxu0 0.0
        %1060 = vmatprep.subr.mxu0 0.0
        %1061 = vmatpush1.msra.mxu0 0.0
        %1062 = vmatprep.subr.mxu0 0.0
        %1063 = vmatpush1.msra.mxu0 0.0
        %1064 = vmatprep.subr.mxu0 0.0
        %1065 = vmatpush1.msra.mxu0 0.0
        %1066 = vmatprep.subr.mxu0 0.0
        %1067 = vmatpush1.msra.mxu0 0.0
        %1068 = vmatprep.subr.mxu0 0.0
        %1069 = vmatpush1.msra.mxu0 0.0
        %1070 = vmatprep.subr.mxu0 0.0
        %1071 = vmatpush1.msra.mxu0 0.0
        %1072 = vmatprep.subr.mxu0 0.0
        %1073 = vmatpush1.msra.mxu0 0.0
        %1074 = vmatprep.subr.mxu0 0.0
        %1075 = vmatpush1.msra.mxu0 0.0
        %1076 = vmatprep.subr.mxu0 0.0
        %1077 = vmatpush1.msra.mxu0 0.0
        %1078 = vmatprep.subr.mxu0 0.0
        %1079 = vmatpush1.msra.mxu0 0.0
        %1080 = vmatprep.subr.mxu0 0.0
        %1081 = vmatpush1.msra.mxu0 0.0
        %1082 = vmatprep.subr.mxu0 0.0
        %1083 = vmatpush1.msra.mxu0 0.0
        %1084 = vmatprep.subr.mxu0 0.0
        %1085 = vmatpush1.msra.mxu0 0.0
        %1086 = vmatprep.subr.mxu0 0.0
        %1087 = vmatpush1.msra.mxu0 0.0
        %1088 = vmatprep.mubr.f32.mxu0 0.0
        %1089 = vmatmul.mubr.f32.gmra.mrb[0].mxu0 %v1019
        %v1090 = vpop.f32.mrb[0].mxu0
        %v1091 = vadd.f32 %v1015, %v1090
        %v1092 = vpop.f32.mrb[0].mxu0
        %1093 = vdwg.mxu0
        %s1094 = scalar_lea.vmem %s1, 40
        %v1095 = vld [vmem:[%s1094] sm:$0xf]
        %s1096 = scalar_lea.vmem %s239, 24 [#allocation2]
        %v1097 = vld [vmem:[%s1096] sm:$0xf]
        %v1099 = vsel %vm279, %v1095, 0
        %v1102 = vsel %vm283, %v1097, 0
        %1104 = vmatprep.subr.mxu0 0.0
        %1105 = vmatpush1.msra.mxu0 %v1102
        %1106 = vmatprep.subr.mxu0 0.0
        %1107 = vmatpush1.msra.mxu0 0.0
        %1108 = vmatprep.subr.mxu0 0.0
        %1109 = vmatpush1.msra.mxu0 0.0
        %1110 = vmatprep.subr.mxu0 0.0
        %1111 = vmatpush1.msra.mxu0 0.0
        %1112 = vmatprep.subr.mxu0 0.0
        %1113 = vmatpush1.msra.mxu0 0.0
        %1114 = vmatprep.subr.mxu0 0.0
        %1115 = vmatpush1.msra.mxu0 0.0
        %1116 = vmatprep.subr.mxu0 0.0
        %1117 = vmatpush1.msra.mxu0 0.0
        %1118 = vmatprep.subr.mxu0 0.0
        %1119 = vmatpush1.msra.mxu0 0.0
        %1120 = vmatprep.subr.mxu0 0.0
        %1121 = vmatpush1.msra.mxu0 0.0
        %1122 = vmatprep.subr.mxu0 0.0
        %1123 = vmatpush1.msra.mxu0 0.0
        %1124 = vmatprep.subr.mxu0 0.0
        %1125 = vmatpush1.msra.mxu0 0.0
        %1126 = vmatprep.subr.mxu0 0.0
        %1127 = vmatpush1.msra.mxu0 0.0
        %1128 = vmatprep.subr.mxu0 0.0
        %1129 = vmatpush1.msra.mxu0 0.0
        %1130 = vmatprep.subr.mxu0 0.0
        %1131 = vmatpush1.msra.mxu0 0.0
        %1132 = vmatprep.subr.mxu0 0.0
        %1133 = vmatpush1.msra.mxu0 0.0
        %1134 = vmatprep.subr.mxu0 0.0
        %1135 = vmatpush1.msra.mxu0 0.0
        %1136 = vmatprep.subr.mxu0 0.0
        %1137 = vmatpush1.msra.mxu0 0.0
        %1138 = vmatprep.subr.mxu0 0.0
        %1139 = vmatpush1.msra.mxu0 0.0
        %1140 = vmatprep.subr.mxu0 0.0
        %1141 = vmatpush1.msra.mxu0 0.0
        %1142 = vmatprep.subr.mxu0 0.0
        %1143 = vmatpush1.msra.mxu0 0.0
        %1144 = vmatprep.subr.mxu0 0.0
        %1145 = vmatpush1.msra.mxu0 0.0
        %1146 = vmatprep.subr.mxu0 0.0
        %1147 = vmatpush1.msra.mxu0 0.0
        %1148 = vmatprep.subr.mxu0 0.0
        %1149 = vmatpush1.msra.mxu0 0.0
        %1150 = vmatprep.subr.mxu0 0.0
        %1151 = vmatpush1.msra.mxu0 0.0
        %1152 = vmatprep.subr.mxu0 0.0
        %1153 = vmatpush1.msra.mxu0 0.0
        %1154 = vmatprep.subr.mxu0 0.0
        %1155 = vmatpush1.msra.mxu0 0.0
        %1156 = vmatprep.subr.mxu0 0.0
        %1157 = vmatpush1.msra.mxu0 0.0
        %1158 = vmatprep.subr.mxu0 0.0
        %1159 = vmatpush1.msra.mxu0 0.0
        %1160 = vmatprep.subr.mxu0 0.0
        %1161 = vmatpush1.msra.mxu0 0.0
        %1162 = vmatprep.subr.mxu0 0.0
        %1163 = vmatpush1.msra.mxu0 0.0
        %1164 = vmatprep.subr.mxu0 0.0
        %1165 = vmatpush1.msra.mxu0 0.0
        %1166 = vmatprep.subr.mxu0 0.0
        %1167 = vmatpush1.msra.mxu0 0.0
        %1168 = vmatprep.mubr.f32.mxu0 0.0
        %1169 = vmatmul.mubr.f32.gmra.mrb[0].mxu0 %v1099
        %v1170 = vpop.f32.mrb[0].mxu0
        %v1171 = vadd.f32 0.0, %v1170
        %v1172 = vpop.f32.mrb[0].mxu0
        %1173 = vdwg.mxu0
        %v1174 = vadd.f32 %v1091, %v1171
        %s1175 = scalar_lea.vmem %s1, 44
        %v1176 = vld [vmem:[%s1175] sm:$0xf]
        %s1177 = scalar_lea.vmem %s239, 28 [#allocation2]
        %v1178 = vld [vmem:[%s1177] sm:$0xf]
        %v1180 = vsel %vm279, %v1176, 0
        %v1183 = vsel %vm283, %v1178, 0
        %1185 = vmatprep.subr.mxu0 0.0
        %1186 = vmatpush1.msra.mxu0 %v1183
        %1187 = vmatprep.subr.mxu0 0.0
        %1188 = vmatpush1.msra.mxu0 0.0
        %1189 = vmatprep.subr.mxu0 0.0
        %1190 = vmatpush1.msra.mxu0 0.0
        %1191 = vmatprep.subr.mxu0 0.0
        %1192 = vmatpush1.msra.mxu0 0.0
        %1193 = vmatprep.subr.mxu0 0.0
        %1194 = vmatpush1.msra.mxu0 0.0
        %1195 = vmatprep.subr.mxu0 0.0
        %1196 = vmatpush1.msra.mxu0 0.0
        %1197 = vmatprep.subr.mxu0 0.0
        %1198 = vmatpush1.msra.mxu0 0.0
        %1199 = vmatprep.subr.mxu0 0.0
        %1200 = vmatpush1.msra.mxu0 0.0
        %1201 = vmatprep.subr.mxu0 0.0
        %1202 = vmatpush1.msra.mxu0 0.0
        %1203 = vmatprep.subr.mxu0 0.0
        %1204 = vmatpush1.msra.mxu0 0.0
        %1205 = vmatprep.subr.mxu0 0.0
        %1206 = vmatpush1.msra.mxu0 0.0
        %1207 = vmatprep.subr.mxu0 0.0
        %1208 = vmatpush1.msra.mxu0 0.0
        %1209 = vmatprep.subr.mxu0 0.0
        %1210 = vmatpush1.msra.mxu0 0.0
        %1211 = vmatprep.subr.mxu0 0.0
        %1212 = vmatpush1.msra.mxu0 0.0
        %1213 = vmatprep.subr.mxu0 0.0
        %1214 = vmatpush1.msra.mxu0 0.0
        %1215 = vmatprep.subr.mxu0 0.0
        %1216 = vmatpush1.msra.mxu0 0.0
        %1217 = vmatprep.subr.mxu0 0.0
        %1218 = vmatpush1.msra.mxu0 0.0
        %1219 = vmatprep.subr.mxu0 0.0
        %1220 = vmatpush1.msra.mxu0 0.0
        %1221 = vmatprep.subr.mxu0 0.0
        %1222 = vmatpush1.msra.mxu0 0.0
        %1223 = vmatprep.subr.mxu0 0.0
        %1224 = vmatpush1.msra.mxu0 0.0
        %1225 = vmatprep.subr.mxu0 0.0
        %1226 = vmatpush1.msra.mxu0 0.0
        %1227 = vmatprep.subr.mxu0 0.0
        %1228 = vmatpush1.msra.mxu0 0.0
        %1229 = vmatprep.subr.mxu0 0.0
        %1230 = vmatpush1.msra.mxu0 0.0
        %1231 = vmatprep.subr.mxu0 0.0
        %1232 = vmatpush1.msra.mxu0 0.0
        %1233 = vmatprep.subr.mxu0 0.0
        %1234 = vmatpush1.msra.mxu0 0.0
        %1235 = vmatprep.subr.mxu0 0.0
        %1236 = vmatpush1.msra.mxu0 0.0
        %1237 = vmatprep.subr.mxu0 0.0
        %1238 = vmatpush1.msra.mxu0 0.0
        %1239 = vmatprep.subr.mxu0 0.0
        %1240 = vmatpush1.msra.mxu0 0.0
        %1241 = vmatprep.subr.mxu0 0.0
        %1242 = vmatpush1.msra.mxu0 0.0
        %1243 = vmatprep.subr.mxu0 0.0
        %1244 = vmatpush1.msra.mxu0 0.0
        %1245 = vmatprep.subr.mxu0 0.0
        %1246 = vmatpush1.msra.mxu0 0.0
        %1247 = vmatprep.subr.mxu0 0.0
        %1248 = vmatpush1.msra.mxu0 0.0
        %1249 = vmatprep.mubr.f32.mxu0 0.0
        %1250 = vmatmul.mubr.f32.gmra.mrb[0].mxu0 %v1180
        %v1251 = vpop.f32.mrb[0].mxu0
        %v1252 = vadd.f32 0.0, %v1251
        %v1253 = vpop.f32.mrb[0].mxu0
        %1254 = vdwg.mxu0
        %v1255 = vadd.f32 %v1174, %v1252
        %s1256 = scalar_lea.vmem %s256, 8 [#allocation3]
        %1257 = vst [vmem:[%s1256] sm:$0xf] %v1255
        %v1258 = vsel %vm283, %v1255, 0.0
        %1259 = vadd.xlane.f32.xlu0 %v1258
        %v1260 = vpop.xlane.xlu0 %1259
        %v1261 = vadd.f32 %v930, %v1260
        %v1262 = vmul.f32 %v1255, %v1255
        %v1263 = vsel %vm283, %v1262, 0.0
        %1264 = vadd.xlane.f32.xlu0 %v1263
        %v1265 = vpop.xlane.xlu0 %1264
        %v1266 = vadd.f32 %v935, %v1265
        %s1267 = scalar_lea.vmem %s1, 48
        %v1268 = vld [vmem:[%s1267] sm:$0xf]
        %v1269 = vld [vmem:[%s516] sm:$0xf]
        %s1270 = scalar_lea.vmem %s1, 52
        %v1271 = vld [vmem:[%s1270] sm:$0xf]
        %v1272 = vld [vmem:[%s846] sm:$0xf]
        %v1274 = vsel %vm279, %v1271, 0
        %v1277 = vsel %vm283, %v1272, 0
        %1279 = vmatprep.subr.mxu0 0.0
        %1280 = vmatpush1.msra.mxu0 %v1277
        %1281 = vmatprep.subr.mxu0 0.0
        %1282 = vmatpush1.msra.mxu0 0.0
        %1283 = vmatprep.subr.mxu0 0.0
        %1284 = vmatpush1.msra.mxu0 0.0
        %1285 = vmatprep.subr.mxu0 0.0
        %1286 = vmatpush1.msra.mxu0 0.0
        %1287 = vmatprep.subr.mxu0 0.0
        %1288 = vmatpush1.msra.mxu0 0.0
        %1289 = vmatprep.subr.mxu0 0.0
        %1290 = vmatpush1.msra.mxu0 0.0
        %1291 = vmatprep.subr.mxu0 0.0
        %1292 = vmatpush1.msra.mxu0 0.0
        %1293 = vmatprep.subr.mxu0 0.0
        %1294 = vmatpush1.msra.mxu0 0.0
        %1295 = vmatprep.subr.mxu0 0.0
        %1296 = vmatpush1.msra.mxu0 0.0
        %1297 = vmatprep.subr.mxu0 0.0
        %1298 = vmatpush1.msra.mxu0 0.0
        %1299 = vmatprep.subr.mxu0 0.0
        %1300 = vmatpush1.msra.mxu0 0.0
        %1301 = vmatprep.subr.mxu0 0.0
        %1302 = vmatpush1.msra.mxu0 0.0
        %1303 = vmatprep.subr.mxu0 0.0
        %1304 = vmatpush1.msra.mxu0 0.0
        %1305 = vmatprep.subr.mxu0 0.0
        %1306 = vmatpush1.msra.mxu0 0.0
        %1307 = vmatprep.subr.mxu0 0.0
        %1308 = vmatpush1.msra.mxu0 0.0
        %1309 = vmatprep.subr.mxu0 0.0
        %1310 = vmatpush1.msra.mxu0 0.0
        %1311 = vmatprep.subr.mxu0 0.0
        %1312 = vmatpush1.msra.mxu0 0.0
        %1313 = vmatprep.subr.mxu0 0.0
        %1314 = vmatpush1.msra.mxu0 0.0
        %1315 = vmatprep.subr.mxu0 0.0
        %1316 = vmatpush1.msra.mxu0 0.0
        %1317 = vmatprep.subr.mxu0 0.0
        %1318 = vmatpush1.msra.mxu0 0.0
        %1319 = vmatprep.subr.mxu0 0.0
        %1320 = vmatpush1.msra.mxu0 0.0
        %1321 = vmatprep.subr.mxu0 0.0
        %1322 = vmatpush1.msra.mxu0 0.0
        %1323 = vmatprep.subr.mxu0 0.0
        %1324 = vmatpush1.msra.mxu0 0.0
        %1325 = vmatprep.subr.mxu0 0.0
        %1326 = vmatpush1.msra.mxu0 0.0
        %1327 = vmatprep.subr.mxu0 0.0
        %1328 = vmatpush1.msra.mxu0 0.0
        %1329 = vmatprep.subr.mxu0 0.0
        %1330 = vmatpush1.msra.mxu0 0.0
        %1331 = vmatprep.subr.mxu0 0.0
        %1332 = vmatpush1.msra.mxu0 0.0
        %1333 = vmatprep.subr.mxu0 0.0
        %1334 = vmatpush1.msra.mxu0 0.0
        %1335 = vmatprep.subr.mxu0 0.0
        %1336 = vmatpush1.msra.mxu0 0.0
        %1337 = vmatprep.subr.mxu0 0.0
        %1338 = vmatpush1.msra.mxu0 0.0
        %1339 = vmatprep.subr.mxu0 0.0
        %1340 = vmatpush1.msra.mxu0 0.0
        %1341 = vmatprep.subr.mxu0 0.0
        %1342 = vmatpush1.msra.mxu0 0.0
        %1343 = vmatprep.mubr.f32.mxu0 0.0
        %1344 = vmatmul.mubr.f32.gmra.mrb[0].mxu0 %v1274
        %v1345 = vpop.f32.mrb[0].mxu0
        %v1346 = vadd.f32 0.0, %v1345
        %v1347 = vpop.f32.mrb[0].mxu0
        %1348 = vdwg.mxu0
        %v1350 = vsel %vm279, %v1268, 0
        %v1353 = vsel %vm283, %v1269, 0
        %1355 = vmatprep.subr.mxu0 0.0
        %1356 = vmatpush1.msra.mxu0 %v1353
        %1357 = vmatprep.subr.mxu0 0.0
        %1358 = vmatpush1.msra.mxu0 0.0
        %1359 = vmatprep.subr.mxu0 0.0
        %1360 = vmatpush1.msra.mxu0 0.0
        %1361 = vmatprep.subr.mxu0 0.0
        %1362 = vmatpush1.msra.mxu0 0.0
        %1363 = vmatprep.subr.mxu0 0.0
        %1364 = vmatpush1.msra.mxu0 0.0
        %1365 = vmatprep.subr.mxu0 0.0
        %1366 = vmatpush1.msra.mxu0 0.0
        %1367 = vmatprep.subr.mxu0 0.0
        %1368 = vmatpush1.msra.mxu0 0.0
        %1369 = vmatprep.subr.mxu0 0.0
        %1370 = vmatpush1.msra.mxu0 0.0
        %1371 = vmatprep.subr.mxu0 0.0
        %1372 = vmatpush1.msra.mxu0 0.0
        %1373 = vmatprep.subr.mxu0 0.0
        %1374 = vmatpush1.msra.mxu0 0.0
        %1375 = vmatprep.subr.mxu0 0.0
        %1376 = vmatpush1.msra.mxu0 0.0
        %1377 = vmatprep.subr.mxu0 0.0
        %1378 = vmatpush1.msra.mxu0 0.0
        %1379 = vmatprep.subr.mxu0 0.0
        %1380 = vmatpush1.msra.mxu0 0.0
        %1381 = vmatprep.subr.mxu0 0.0
        %1382 = vmatpush1.msra.mxu0 0.0
        %1383 = vmatprep.subr.mxu0 0.0
        %1384 = vmatpush1.msra.mxu0 0.0
        %1385 = vmatprep.subr.mxu0 0.0
        %1386 = vmatpush1.msra.mxu0 0.0
        %1387 = vmatprep.subr.mxu0 0.0
        %1388 = vmatpush1.msra.mxu0 0.0
        %1389 = vmatprep.subr.mxu0 0.0
        %1390 = vmatpush1.msra.mxu0 0.0
        %1391 = vmatprep.subr.mxu0 0.0
        %1392 = vmatpush1.msra.mxu0 0.0
        %1393 = vmatprep.subr.mxu0 0.0
        %1394 = vmatpush1.msra.mxu0 0.0
        %1395 = vmatprep.subr.mxu0 0.0
        %1396 = vmatpush1.msra.mxu0 0.0
        %1397 = vmatprep.subr.mxu0 0.0
        %1398 = vmatpush1.msra.mxu0 0.0
        %1399 = vmatprep.subr.mxu0 0.0
        %1400 = vmatpush1.msra.mxu0 0.0
        %1401 = vmatprep.subr.mxu0 0.0
        %1402 = vmatpush1.msra.mxu0 0.0
        %1403 = vmatprep.subr.mxu0 0.0
        %1404 = vmatpush1.msra.mxu0 0.0
        %1405 = vmatprep.subr.mxu0 0.0
        %1406 = vmatpush1.msra.mxu0 0.0
        %1407 = vmatprep.subr.mxu0 0.0
        %1408 = vmatpush1.msra.mxu0 0.0
        %1409 = vmatprep.subr.mxu0 0.0
        %1410 = vmatpush1.msra.mxu0 0.0
        %1411 = vmatprep.subr.mxu0 0.0
        %1412 = vmatpush1.msra.mxu0 0.0
        %1413 = vmatprep.subr.mxu0 0.0
        %1414 = vmatpush1.msra.mxu0 0.0
        %1415 = vmatprep.subr.mxu0 0.0
        %1416 = vmatpush1.msra.mxu0 0.0
        %1417 = vmatprep.subr.mxu0 0.0
        %1418 = vmatpush1.msra.mxu0 0.0
        %1419 = vmatprep.mubr.f32.mxu0 0.0
        %1420 = vmatmul.mubr.f32.gmra.mrb[0].mxu0 %v1350
        %v1421 = vpop.f32.mrb[0].mxu0
        %v1422 = vadd.f32 %v1346, %v1421
        %v1423 = vpop.f32.mrb[0].mxu0
        %1424 = vdwg.mxu0
        %s1425 = scalar_lea.vmem %s1, 56
        %v1426 = vld [vmem:[%s1425] sm:$0xf]
        %v1427 = vld [vmem:[%s1177] sm:$0xf]
        %v1429 = vsel %vm279, %v1426, 0
        %v1432 = vsel %vm283, %v1427, 0
        %1434 = vmatprep.subr.mxu0 0.0
        %1435 = vmatpush1.msra.mxu0 %v1432
        %1436 = vmatprep.subr.mxu0 0.0
        %1437 = vmatpush1.msra.mxu0 0.0
        %1438 = vmatprep.subr.mxu0 0.0
        %1439 = vmatpush1.msra.mxu0 0.0
        %1440 = vmatprep.subr.mxu0 0.0
        %1441 = vmatpush1.msra.mxu0 0.0
        %1442 = vmatprep.subr.mxu0 0.0
        %1443 = vmatpush1.msra.mxu0 0.0
        %1444 = vmatprep.subr.mxu0 0.0
        %1445 = vmatpush1.msra.mxu0 0.0
        %1446 = vmatprep.subr.mxu0 0.0
        %1447 = vmatpush1.msra.mxu0 0.0
        %1448 = vmatprep.subr.mxu0 0.0
        %1449 = vmatpush1.msra.mxu0 0.0
        %1450 = vmatprep.subr.mxu0 0.0
        %1451 = vmatpush1.msra.mxu0 0.0
        %1452 = vmatprep.subr.mxu0 0.0
        %1453 = vmatpush1.msra.mxu0 0.0
        %1454 = vmatprep.subr.mxu0 0.0
        %1455 = vmatpush1.msra.mxu0 0.0
        %1456 = vmatprep.subr.mxu0 0.0
        %1457 = vmatpush1.msra.mxu0 0.0
        %1458 = vmatprep.subr.mxu0 0.0
        %1459 = vmatpush1.msra.mxu0 0.0
        %1460 = vmatprep.subr.mxu0 0.0
        %1461 = vmatpush1.msra.mxu0 0.0
        %1462 = vmatprep.subr.mxu0 0.0
        %1463 = vmatpush1.msra.mxu0 0.0
        %1464 = vmatprep.subr.mxu0 0.0
        %1465 = vmatpush1.msra.mxu0 0.0
        %1466 = vmatprep.subr.mxu0 0.0
        %1467 = vmatpush1.msra.mxu0 0.0
        %1468 = vmatprep.subr.mxu0 0.0
        %1469 = vmatpush1.msra.mxu0 0.0
        %1470 = vmatprep.subr.mxu0 0.0
        %1471 = vmatpush1.msra.mxu0 0.0
        %1472 = vmatprep.subr.mxu0 0.0
        %1473 = vmatpush1.msra.mxu0 0.0
        %1474 = vmatprep.subr.mxu0 0.0
        %1475 = vmatpush1.msra.mxu0 0.0
        %1476 = vmatprep.subr.mxu0 0.0
        %1477 = vmatpush1.msra.mxu0 0.0
        %1478 = vmatprep.subr.mxu0 0.0
        %1479 = vmatpush1.msra.mxu0 0.0
        %1480 = vmatprep.subr.mxu0 0.0
        %1481 = vmatpush1.msra.mxu0 0.0
        %1482 = vmatprep.subr.mxu0 0.0
        %1483 = vmatpush1.msra.mxu0 0.0
        %1484 = vmatprep.subr.mxu0 0.0
        %1485 = vmatpush1.msra.mxu0 0.0
        %1486 = vmatprep.subr.mxu0 0.0
        %1487 = vmatpush1.msra.mxu0 0.0
        %1488 = vmatprep.subr.mxu0 0.0
        %1489 = vmatpush1.msra.mxu0 0.0
        %1490 = vmatprep.subr.mxu0 0.0
        %1491 = vmatpush1.msra.mxu0 0.0
        %1492 = vmatprep.subr.mxu0 0.0
        %1493 = vmatpush1.msra.mxu0 0.0
        %1494 = vmatprep.subr.mxu0 0.0
        %1495 = vmatpush1.msra.mxu0 0.0
        %1496 = vmatprep.subr.mxu0 0.0
        %1497 = vmatpush1.msra.mxu0 0.0
        %1498 = vmatprep.mubr.f32.mxu0 0.0
        %1499 = vmatmul.mubr.f32.gmra.mrb[0].mxu0 %v1429
        %v1500 = vpop.f32.mrb[0].mxu0
        %v1501 = vadd.f32 0.0, %v1500
        %v1502 = vpop.f32.mrb[0].mxu0
        %1503 = vdwg.mxu0
        %v1504 = vadd.f32 %v1422, %v1501
        %s1505 = scalar_lea.vmem %s1, 60
        %v1506 = vld [vmem:[%s1505] sm:$0xf]
        %s1507 = scalar_lea.vmem %s239, 32 [#allocation2]
        %v1508 = vld [vmem:[%s1507] sm:$0xf]
        %v1510 = vsel %vm279, %v1506, 0
        %v1513 = vsel %vm283, %v1508, 0
        %1515 = vmatprep.subr.mxu0 0.0
        %1516 = vmatpush1.msra.mxu0 %v1513
        %1517 = vmatprep.subr.mxu0 0.0
        %1518 = vmatpush1.msra.mxu0 0.0
        %1519 = vmatprep.subr.mxu0 0.0
        %1520 = vmatpush1.msra.mxu0 0.0
        %1521 = vmatprep.subr.mxu0 0.0
        %1522 = vmatpush1.msra.mxu0 0.0
        %1523 = vmatprep.subr.mxu0 0.0
        %1524 = vmatpush1.msra.mxu0 0.0
        %1525 = vmatprep.subr.mxu0 0.0
        %1526 = vmatpush1.msra.mxu0 0.0
        %1527 = vmatprep.subr.mxu0 0.0
        %1528 = vmatpush1.msra.mxu0 0.0
        %1529 = vmatprep.subr.mxu0 0.0
        %1530 = vmatpush1.msra.mxu0 0.0
        %1531 = vmatprep.subr.mxu0 0.0
        %1532 = vmatpush1.msra.mxu0 0.0
        %1533 = vmatprep.subr.mxu0 0.0
        %1534 = vmatpush1.msra.mxu0 0.0
        %1535 = vmatprep.subr.mxu0 0.0
        %1536 = vmatpush1.msra.mxu0 0.0
        %1537 = vmatprep.subr.mxu0 0.0
        %1538 = vmatpush1.msra.mxu0 0.0
        %1539 = vmatprep.subr.mxu0 0.0
        %1540 = vmatpush1.msra.mxu0 0.0
        %1541 = vmatprep.subr.mxu0 0.0
        %1542 = vmatpush1.msra.mxu0 0.0
        %1543 = vmatprep.subr.mxu0 0.0
        %1544 = vmatpush1.msra.mxu0 0.0
        %1545 = vmatprep.subr.mxu0 0.0
        %1546 = vmatpush1.msra.mxu0 0.0
        %1547 = vmatprep.subr.mxu0 0.0
        %1548 = vmatpush1.msra.mxu0 0.0
        %1549 = vmatprep.subr.mxu0 0.0
        %1550 = vmatpush1.msra.mxu0 0.0
        %1551 = vmatprep.subr.mxu0 0.0
        %1552 = vmatpush1.msra.mxu0 0.0
        %1553 = vmatprep.subr.mxu0 0.0
        %1554 = vmatpush1.msra.mxu0 0.0
        %1555 = vmatprep.subr.mxu0 0.0
        %1556 = vmatpush1.msra.mxu0 0.0
        %1557 = vmatprep.subr.mxu0 0.0
        %1558 = vmatpush1.msra.mxu0 0.0
        %1559 = vmatprep.subr.mxu0 0.0
        %1560 = vmatpush1.msra.mxu0 0.0
        %1561 = vmatprep.subr.mxu0 0.0
        %1562 = vmatpush1.msra.mxu0 0.0
        %1563 = vmatprep.subr.mxu0 0.0
        %1564 = vmatpush1.msra.mxu0 0.0
        %1565 = vmatprep.subr.mxu0 0.0
        %1566 = vmatpush1.msra.mxu0 0.0
        %1567 = vmatprep.subr.mxu0 0.0
        %1568 = vmatpush1.msra.mxu0 0.0
        %1569 = vmatprep.subr.mxu0 0.0
        %1570 = vmatpush1.msra.mxu0 0.0
        %1571 = vmatprep.subr.mxu0 0.0
        %1572 = vmatpush1.msra.mxu0 0.0
        %1573 = vmatprep.subr.mxu0 0.0
        %1574 = vmatpush1.msra.mxu0 0.0
        %1575 = vmatprep.subr.mxu0 0.0
        %1576 = vmatpush1.msra.mxu0 0.0
        %1577 = vmatprep.subr.mxu0 0.0
        %1578 = vmatpush1.msra.mxu0 0.0
        %1579 = vmatprep.mubr.f32.mxu0 0.0
        %1580 = vmatmul.mubr.f32.gmra.mrb[0].mxu0 %v1510
        %v1581 = vpop.f32.mrb[0].mxu0
        %v1582 = vadd.f32 0.0, %v1581
        %v1583 = vpop.f32.mrb[0].mxu0
        %1584 = vdwg.mxu0
        %v1585 = vadd.f32 %v1504, %v1582
        %s1586 = scalar_lea.vmem %s256, 12 [#allocation3]
        %1587 = vst [vmem:[%s1586] sm:$0xf] %v1585
        %v1588 = vsel %vm283, %v1585, 0.0
        %1589 = vadd.xlane.f32.xlu0 %v1588
        %v1590 = vpop.xlane.xlu0 %1589
        %v1591 = vadd.f32 %v1261, %v1590
        %v1592 = vmul.f32 %v1585, %v1585
        %v1593 = vsel %vm283, %v1592, 0.0
        %1594 = vadd.xlane.f32.xlu0 %v1593
        %v1595 = vpop.xlane.xlu0 %1594
        %v1596 = vadd.f32 %v1266, %v1595
        %v1597 = vld [vmem:[%s266] sm:$0xf]
        %v1598 = vadd.f32 %v1597, %v1591
        %vm1599 = vcmask 3072
        %1600 = vst.msk [vmem:[%s266] sm:$0xf] %vm1599, %v1598
        %v1601 = vld [vmem:[%s266] sm:$0xf]
        %v1602 = vadd.f32 %v1601, %v1596
        %vm1603 = vcmask 11272
        %1604 = vst.msk [vmem:[%s266] sm:$0xf] %vm1603, %v1602
        %s1605 = sand.u32 %s86, 1
        %s1606 = sand.u32 %s86, 1
        %s1607 = smul.addr %s1606, 16
        %s1608 = scalar_lea.vmem [#allocation3], %s1607
        %p1609 = scmp.lt.s32.totalorder %s19, 1
        %s1610 = scalar_select %p1609, %s19, 1
        %s1611 = smul.addr %s1610, 4
        %s1612 = scalar_lea.vmem %s3, %s1611
        // Predicated region
        $region74: #{unet_up_forward.2} parent=64 // pred_check
          %p1613 = pneg %p96
        $region75: #{unet_up_forward.2} parent=64 // pred_check_branch
          %1615 = sbr.rel (%p1613) target = $region77
        $region76: #{unet_up_forward.2} parent=64 // pred_region
          %s1616 = smul.addr %s19, 8
          %s1617 = sadd.s32 %s20, %s1616
          %s1618 = smul.addr %s1617, 4
          %s1619 = scalar_lea.vmem %s2, %s1618
          // Predicated region
          $region78: #{unet_up_forward.2} parent=76 // pred_check
            _
          $region79: #{unet_up_forward.2} parent=76 // pred_check_branch
            %1621 = sbr.rel (0) target = $region81
          $region80: #{unet_up_forward.2} parent=76 // pred_region
            // Predicated region
            $region82: #{unet_up_forward.2} parent=80 // pred_check
              _
            $region83: #{unet_up_forward.2} parent=80 // pred_check_branch
              %1623 = sbr.rel target = $region85
            $region84: #{unet_up_forward.2} parent=80 // pred_region
              // Predicated region
              $region97: #{unet_up_forward.2} parent=84 // pred_check
                _
              $region98: #{unet_up_forward.2} parent=84 // pred_check_branch
                %1644 = sbr.rel (0) target = $region100
              $region99: #{unet_up_forward.2} parent=84 // pred_region
                loop: start=0, step=1, limit=1
                $region101: #{unet_up_forward.2} parent=99 // loop_pre_header
                  _
                $region102: #{unet_up_forward.2} parent=99 // loop_header
                  %s1646 = sphi 0, %s1650
                  %p1647 = scmp.ge.s32.totalorder %s1646, 1
                  %s1651 = sphi %s1608, %s1608
                  %s1652 = sphi %s1619, %s1619
                $region103: #{unet_up_forward.2} parent=99 // loop_header_branch
                  %1649 = sbr.rel (%p1647) target = $region107
                $region104: #{unet_up_forward.2} parent=99 // loop_body
                  _
                $region105: #{unet_up_forward.2} parent=99 // loop_footer
                  %s1650 = sadd.s32 1, %s1646
                $region106: #{unet_up_forward.2} parent=99 // loop_footer_branch
                  %1645 = sbr.rel target = $region102
                $region107: #{unet_up_forward.2} parent=99 // loop_exit
                  _
                loop: start=0, step=1, limit=1
                $region108: #{unet_up_forward.2} parent=99 // loop_pre_header
                  _
                $region109: #{unet_up_forward.2} parent=99 // loop_header
                  %s1655 = sphi 0, %s1659
                  %p1656 = scmp.ge.s32.totalorder %s1655, 1
                  %s1660 = sphi %s1608, %s1608
                  %s1661 = sphi %s1619, %s1619
                $region110: #{unet_up_forward.2} parent=99 // loop_header_branch
                  %1658 = sbr.rel (%p1656) target = $region114
                $region111: #{unet_up_forward.2} parent=99 // loop_body
                  %v1662 = vld [vmem:[%s1660] sm:$0xf]
                  %1663 = vst [vmem:[%s1661] sm:$0xf] %v1662
                  %v1664 = vld [vmem:[%s1660 + $0x4] sm:$0xf]
                  %1665 = vst [vmem:[%s1661 + $0x8] sm:$0xf] %v1664
                  %v1666 = vld [vmem:[%s1660 + $0x8] sm:$0xf]
                  %1667 = vst [vmem:[%s1661 + $0x10] sm:$0xf] %v1666
                  %v1668 = vld [vmem:[%s1660 + $0xc] sm:$0xf]
                  %1669 = vst [vmem:[%s1661 + $0x18] sm:$0xf] %v1668
                $region112: #{unet_up_forward.2} parent=99 // loop_footer
                  %s1659 = sadd.s32 1, %s1655
                $region113: #{unet_up_forward.2} parent=99 // loop_footer_branch
                  %1654 = sbr.rel target = $region109
                $region114: #{unet_up_forward.2} parent=99 // loop_exit
                  _
              $region100: #{unet_up_forward.2} parent=84 // pred_fallthru
                _
            $region85: #{unet_up_forward.2} parent=80 // pred_fallthru
              _
            // Predicated region
            $region86: #{unet_up_forward.2} parent=80 // pred_check
              _
            $region87: #{unet_up_forward.2} parent=80 // pred_check_branch
              %1625 = sbr.rel (0) target = $region89
            $region88: #{unet_up_forward.2} parent=80 // pred_region
              loop: start=0, step=1, limit=1
              $region90: #{unet_up_forward.2} parent=88 // loop_pre_header
                _
              $region91: #{unet_up_forward.2} parent=88 // loop_header
                %s1628 = sphi 0, %s1632
                %p1629 = scmp.ge.s32.totalorder %s1628, 1
                %s1633 = sphi %s1608, %s1608
                %s1634 = sphi %s1619, %s1619
              $region92: #{unet_up_forward.2} parent=88 // loop_header_branch
                %1631 = sbr.rel (%p1629) target = $region96
              $region93: #{unet_up_forward.2} parent=88 // loop_body
                %v1635 = vld [vmem:[%s1633] sm:$0xf]
                %1636 = vst [vmem:[%s1634] sm:$0xf] %v1635
                %v1637 = vld [vmem:[%s1633 + $0x4] sm:$0xf]
                %1638 = vst [vmem:[%s1634 + $0x8] sm:$0xf] %v1637
                %v1639 = vld [vmem:[%s1633 + $0x8] sm:$0xf]
                %1640 = vst [vmem:[%s1634 + $0x10] sm:$0xf] %v1639
                %v1641 = vld [vmem:[%s1633 + $0xc] sm:$0xf]
                %1642 = vst [vmem:[%s1634 + $0x18] sm:$0xf] %v1641
              $region94: #{unet_up_forward.2} parent=88 // loop_footer
                %s1632 = sadd.s32 1, %s1628
              $region95: #{unet_up_forward.2} parent=88 // loop_footer_branch
                %1627 = sbr.rel target = $region91
              $region96: #{unet_up_forward.2} parent=88 // loop_exit
                _
            $region89: #{unet_up_forward.2} parent=80 // pred_fallthru
              _
          $region81: #{unet_up_forward.2} parent=76 // pred_fallthru
            _
          %1670 = vnop
        $region77: #{unet_up_forward.2} parent=64 // pred_fallthru
          _
        // Predicated region
        $region115: #{unet_up_forward.2} parent=64 // pred_check
          %p1671 = pneg %p122
        $region116: #{unet_up_forward.2} parent=64 // pred_check_branch
          %1673 = sbr.rel (%p1671) target = $region118
        $region117: #{unet_up_forward.2} parent=64 // pred_region
          _
        $region118: #{unet_up_forward.2} parent=64 // pred_fallthru
          _
      $region65: #{unet_up_forward.2} parent=5 // pred_fallthru
        _
      %p1674 = scmp.le.s32.totalorder 2, %s10
      // Predicated region
      $region119: #{unet_up_forward.2} parent=5 // pred_check
        %p1675 = pneg %p1674
      $region120: #{unet_up_forward.2} parent=5 // pred_check_branch
        %1677 = sbr.rel (%p1675) target = $region122
      $region121: #{unet_up_forward.2} parent=5 // pred_region
        %s1678 = ssub.s32 %s10, 2
        // Predicated region
        $region123: #{unet_up_forward.2} parent=121 // pred_check
          %p1679 = pneg %p102
        $region124: #{unet_up_forward.2} parent=121 // pred_check_branch
          %1681 = sbr.rel (%p1679) target = $region126
        $region125: #{unet_up_forward.2} parent=121 // pred_region
          %s1682 = sand.u32 %s87, 1
          %s1683 = sand.u32 %s87, 1
          %s1684 = smul.addr %s1683, 16
          %s1685 = scalar_lea.vmem [#allocation3], %s1684
        $region126: #{unet_up_forward.2} parent=121 // pred_fallthru
          _
        // Predicated region
        $region127: #{unet_up_forward.2} parent=121 // pred_check
          %p1686 = pneg %p128
        $region128: #{unet_up_forward.2} parent=121 // pred_check_branch
          %1688 = sbr.rel (%p1686) target = $region130
        $region129: #{unet_up_forward.2} parent=121 // pred_region
          %p1689 = scmp.lt.s32.totalorder %s21, 1
          %s1690 = scalar_select %p1689, %s21, 1
          %s1691 = smul.addr %s1690, 4
          %s1692 = scalar_lea.vmem %s3, %s1691
        $region130: #{unet_up_forward.2} parent=121 // pred_fallthru
          _
      $region122: #{unet_up_forward.2} parent=5 // pred_fallthru
        _
    $region6: #{unet_up_forward.2} parent=1 // loop_footer
      %s14 = sadd.s32 1, %s10
    $region7: #{unet_up_forward.2} parent=1 // loop_footer_branch
      %9 = sbr.rel target = $region3
    $region8: #{unet_up_forward.2} parent=1 // loop_exit
      _

</llo_original>
